<compile_context>
chip_gen: v7x
topology: tpu7x:2x2x1
jax: 0.10.0
libtpu: 0.0.40
codegen_flags: <defaults>
</compile_context>

<pallas_src>
import jax
import jax.numpy as jnp
import numpy as np
from jax.experimental import pallas as pl
from jax.experimental.pallas import tpu as pltpu


def _sigmoid_eup(x):
    # sigmoid(x) = 0.5 * (tanh(x/2) + 1): tanh lowers to the EUP slot, keeping the
    # VALU free for sin()'s polynomial in SinLU.
    return 0.5 * (jnp.tanh(0.5 * x) + 1.0)


def _sinlu(x, a, b):
    # SinLU: sigmoid(x) * (x + a * sin(b * x))
    return _sigmoid_eup(x) * (x + a * jnp.sin(b * x))


def make_cnnblock_kernel(n_batch, hw, block_n):
    inv_count = 1.0 / float(n_batch * hw)   # BN mean over (N, H*W)
    inv_hw = 1.0 / float(hw)                # SE spatial pooling

    def kernel(x_ref, w1_ref, b1_ref, gamma_ref, beta_ref,
               wse1_ref, bse1_ref, wse2_ref, bse2_ref, scal_ref,
               o_ref, sum_ref, sq_ref, wf_ref, bf_ref):
        phase = pl.program_id(0)
        nb = pl.program_id(1)
        last_nb = pl.num_programs(1) - 1
        C = sum_ref.shape[0]

        # ---- phase 0: accumulate BatchNorm batch statistics ----
        @pl.when(jnp.logical_and(phase == 0, nb == 0))
        def _init():
            sum_ref[...] = jnp.zeros_like(sum_ref)
            sq_ref[...] = jnp.zeros_like(sq_ref)

        @pl.when(phase == 0)
        def _accumulate():
            w1 = w1_ref[...]                       # (C, C)
            b1 = b1_ref[...]                       # (C, 1)
            s_acc = jnp.zeros((C, 1), jnp.float32)
            q_acc = jnp.zeros((C, 1), jnp.float32)
            for i in range(block_n):               # static unroll over samples in tile
                y = jnp.dot(w1, x_ref[i], preferred_element_type=jnp.float32) + b1
                s_acc = s_acc + jnp.sum(y, axis=1, keepdims=True)
                q_acc = q_acc + jnp.sum(y * y, axis=1, keepdims=True)
            sum_ref[...] = sum_ref[...] + s_acc
            sq_ref[...] = sq_ref[...] + q_acc

        @pl.when(jnp.logical_and(phase == 0, nb == last_nb))
        def _finalize_stats():
            eps = scal_ref[6]
            mean = sum_ref[...] * inv_count
            var = sq_ref[...] * inv_count - mean * mean      # single-pass variance
            scale = gamma_ref[...] * jax.lax.rsqrt(var + eps)
            shift = beta_ref[...] - mean * scale
            # Fold BN into the conv: BN(Wx + b) = (scale*W) x + (scale*b + shift)
            wf_ref[...] = scale * w1_ref[...]
            bf_ref[...] = scale * b1_ref[...] + shift

        # ---- phase 1: BN-fused conv + SinLU + SE + residual + SinLU, write output ----
        @pl.when(phase == 1)
        def _apply():
            a_net, b_net = scal_ref[0], scal_ref[1]
            a_se, b_se = scal_ref[2], scal_ref[3]
            a_out, b_out = scal_ref[4], scal_ref[5]

            wf = wf_ref[...]                       # (C, C)  BN-fused conv weight
            bf = bf_ref[...]                       # (C, 1)  BN-fused conv bias
            wse1 = wse1_ref[...]                   # (C, R)
            bse1 = bse1_ref[...]                   # (1, R)
            wse2 = wse2_ref[...]                   # (C, R)
            bse2 = bse2_ref[...]                   # (C, 1)

            for i in range(block_n):               # static unroll over samples in tile
                xi = x_ref[i]                      # (C, HW) lane-dense
                y = jnp.dot(wf, xi, preferred_element_type=jnp.float32) + bf
                y = _sinlu(y, a_net, b_net)

                # Squeeze-and-Excitation: tiny per-sample matvecs on VPU/XLU (off MXU).
                pooled = jnp.sum(y, axis=1, keepdims=True) * inv_hw                 # (C,1)
                h = jnp.sum(wse1 * pooled, axis=0, keepdims=True) + bse1            # (1,R)
                h = _sinlu(h, a_se, b_se)
                s = jnp.sum(wse2 * h, axis=1, keepdims=True) + bse2                 # (C,1)
                s = _sigmoid_eup(s)

                y = y * s + xi                     # SE gate + residual
                o_ref[i] = _sinlu(y, a_out, b_out)

    return kernel


def _pick_block_n(n, c, hw, budget_bytes=2 << 20):
    # Largest divisor of N whose x-tile fits the per-buffer budget (tiles are
    # double-buffered for input and output; params/scratch are small).
    best = 1
    for bn in range(1, n + 1):
        if n % bn == 0 and bn * c * hw * 4 <= budget_bytes:
            best = bn
    return best


def init_params(key, in_ch, out_ch):
    assert in_ch == out_ch, "residual add requires in_ch == out_ch"
    reduced = int(out_ch / 2)
    ks = jax.random.split(key, 6)
    p = {
        # conv weight as (C_out, C_in) (PyTorch conv weight squeezed); kernel does W @ x
        'w1':      jax.random.normal(ks[0], (out_ch, in_ch), jnp.float32) * 0.1,
        'b1':      jax.random.normal(ks[1], (out_ch, 1), jnp.float32) * 0.1,
        'gamma':   jnp.ones((out_ch, 1), jnp.float32),    # BatchNorm weight
        'beta':    jnp.zeros((out_ch, 1), jnp.float32),   # BatchNorm bias
        # SE first conv stored transposed as (C, reduced) so the kernel avoids transposes
        'w_se1_t': jax.random.normal(ks[2], (out_ch, reduced), jnp.float32) * 0.1,
        'b_se1':   jax.random.normal(ks[3], (1, reduced), jnp.float32) * 0.1,
        'w_se2':   jax.random.normal(ks[4], (out_ch, reduced), jnp.float32) * 0.1,
        'b_se2':   jax.random.normal(ks[5], (out_ch, 1), jnp.float32) * 0.1,
        # [a_net, b_net, a_se, b_se, a_out, b_out, eps]  (SinLU params default = 1.0)
        'scalars': jnp.array([1.0, 1.0, 1.0, 1.0, 1.0, 1.0, 1e-5], jnp.float32),
    }
    return p


def cnn_block_forward(x_nchw, params):
    N, C, H, W = x_nchw.shape
    HW = H * W
    # Free, contiguous reshape: no HBM transpose passes.
    x = x_nchw.reshape(N, C, HW).astype(jnp.float32)

    block_n = _pick_block_n(N, C, HW)
    num_blocks = N // block_n
    # TODO(synk): if a single sample (C, HW) exceeds the VMEM tile budget, also tile HW.

    kernel = make_cnnblock_kernel(N, HW, block_n)

    # Advisory cost hint for XLA scheduling around the custom call.
    flops = 2 * (2 * N * HW * C * C) + 14 * N * HW * C
    bytes_accessed = 3 * N * C * HW * 4          # x read twice (2 phases) + out written once
    transcendentals = 5 * N * HW * C             # tanh/sin across the SinLU / sigmoid sweeps

    param_vmem = pl.BlockSpec(memory_space=pltpu.MemorySpace.VMEM)

    out = pl.pallas_call(
        kernel,
        out_shape=jax.ShapeDtypeStruct((N, C, HW), jnp.float32),
        grid=(2, num_blocks),
        in_specs=[
            pl.BlockSpec((block_n, C, HW), lambda p, n: (n, 0, 0)),   # x tile (both phases)
            param_vmem,   # w1
            param_vmem,   # b1
            param_vmem,   # gamma
            param_vmem,   # beta
            param_vmem,   # w_se1_t
            param_vmem,   # b_se1
            param_vmem,   # w_se2
            param_vmem,   # b_se2
            pl.BlockSpec(memory_space=pltpu.MemorySpace.SMEM),        # scalars
        ],
        # During phase 0 all steps map to output block 0 (never written there, and the
        # block index never changes, so no garbage writebacks); phase 1 writes each
        # batch-block's lane-dense output tile.
        out_specs=pl.BlockSpec((block_n, C, HW), lambda p, n: (p * n, 0, 0)),
        scratch_shapes=[pltpu.VMEM((C, 1), jnp.float32),   # running per-channel sum
                        pltpu.VMEM((C, 1), jnp.float32),   # running per-channel sum-of-squares
                        pltpu.VMEM((C, C), jnp.float32),   # BN-fused conv weight
                        pltpu.VMEM((C, 1), jnp.float32)],  # BN-fused conv bias
        compiler_params=pltpu.CompilerParams(
            # Both axes 'arbitrary': BN stats accumulate across the batch axis into
            # per-core scratch, so neither axis can be megacore-parallel.
            dimension_semantics=("arbitrary", "arbitrary"),
            vmem_limit_bytes=32 * 1024 * 1024,
        ),
        cost_estimate=pl.CostEstimate(flops=flops,
                                      transcendentals=transcendentals,
                                      bytes_accessed=bytes_accessed),
    )(x, params['w1'], params['b1'], params['gamma'], params['beta'],
      params['w_se1_t'], params['b_se1'], params['w_se2'], params['b_se2'],
      params['scalars'])
    return out.reshape(N, C, H, W)


def _sinlu_ref(x, a, b):
    return jax.nn.sigmoid(x) * (x + a * jnp.sin(b * x))


def cnn_block_reference(x_nchw, params):
    # Pure-JAX reference mirroring the PyTorch forward in the (N, C, HW) layout.
    N, C, H, W = x_nchw.shape
    x = x_nchw.reshape(N, C, H * W).astype(jnp.float32)
    sc = params['scalars']
    y = jnp.einsum('dc,ncs->nds', params['w1'], x) + params['b1'][None]
    mean = jnp.mean(y, axis=(0, 2), keepdims=True)
    var = jnp.mean((y - mean) ** 2, axis=(0, 2), keepdims=True)
    y = (y - mean) / jnp.sqrt(var + sc[6]) * params['gamma'][None] + params['beta'][None]
    y = _sinlu_ref(y, sc[0], sc[1])
    pooled = jnp.mean(y, axis=2, keepdims=True)                                  # (N, C, 1)
    h = jnp.einsum('cr,ncx->nrx', params['w_se1_t'], pooled) + params['b_se1'].T[None]
    h = _sinlu_ref(h, sc[2], sc[3])
    s = jax.nn.sigmoid(jnp.einsum('cr,nrx->ncx', params['w_se2'], h) + params['b_se2'][None])
    y = y * s + x
    y = _sinlu_ref(y, sc[4], sc[5])
    return y.reshape(N, C, H, W)


if __name__ == "__main__":
    N, C, H, W = 2, 8, 16, 16      # in_ch == out_ch == 8 (required by residual add)
    key = jax.random.PRNGKey(0)
    kx, kp = jax.random.split(key)
    x = jax.random.normal(kx, (N, C, H, W), jnp.float32)
    params = init_params(kp, C, C)

    out = jax.block_until_ready(cnn_block_forward(x, params))
    ref = jax.block_until_ready(cnn_block_reference(x, params))

    assert out.shape == (N, C, H, W)
    np.testing.assert_allclose(np.asarray(out), np.asarray(ref), rtol=1e-4, atol=1e-5)
    print("KERNEL_OK")
</pallas_src>

<mosaic_0001>
module attributes {stable_mosaic.version = 11 : i64} {
  func.func @kernel(%arg0: i32, %arg1: i32, %arg2: memref<2x8x256xf32, #tpu.memory_space<vmem>>, %arg3: memref<8x8xf32, #tpu.memory_space<vmem>>, %arg4: memref<8x1xf32, #tpu.memory_space<vmem>>, %arg5: memref<8x1xf32, #tpu.memory_space<vmem>>, %arg6: memref<8x1xf32, #tpu.memory_space<vmem>>, %arg7: memref<8x4xf32, #tpu.memory_space<vmem>>, %arg8: memref<1x4xf32, #tpu.memory_space<vmem>>, %arg9: memref<8x4xf32, #tpu.memory_space<vmem>>, %arg10: memref<8x1xf32, #tpu.memory_space<vmem>>, %arg11: memref<7xf32, #tpu.memory_space<smem>>, %arg12: memref<2x8x256xf32, #tpu.memory_space<vmem>>, %arg13: memref<8x1xf32, #tpu.memory_space<vmem>>, %arg14: memref<8x1xf32, #tpu.memory_space<vmem>>, %arg15: memref<8x8xf32, #tpu.memory_space<vmem>>, %arg16: memref<8x1xf32, #tpu.memory_space<vmem>>) attributes {dimension_semantics = [#tpu.dimension_semantics<arbitrary>, #tpu.dimension_semantics<arbitrary>], iteration_bounds = array<i64: 2, 1>, scalar_prefetch = 0 : i64, scratch_operands = 4 : i64, tpu.core_type = #tpu.core_type<tc>, window_params = [{transform_indices = @transform_0, window_bounds = array<i64: 2, 8, 256>}, {pipeline_mode = #tpu.pipeline_mode<synchronous>, transform_indices = @transform_1, window_bounds = array<i64: 8, 8>}, {pipeline_mode = #tpu.pipeline_mode<synchronous>, transform_indices = @transform_2, window_bounds = array<i64: 8, 1>}, {pipeline_mode = #tpu.pipeline_mode<synchronous>, transform_indices = @transform_3, window_bounds = array<i64: 8, 1>}, {pipeline_mode = #tpu.pipeline_mode<synchronous>, transform_indices = @transform_4, window_bounds = array<i64: 8, 1>}, {pipeline_mode = #tpu.pipeline_mode<synchronous>, transform_indices = @transform_5, window_bounds = array<i64: 8, 4>}, {pipeline_mode = #tpu.pipeline_mode<synchronous>, transform_indices = @transform_6, window_bounds = array<i64: 1, 4>}, {pipeline_mode = #tpu.pipeline_mode<synchronous>, transform_indices = @transform_7, window_bounds = array<i64: 8, 4>}, {pipeline_mode = #tpu.pipeline_mode<synchronous>, transform_indices = @transform_8, window_bounds = array<i64: 8, 1>}, {transform_indices = @transform_9, window_bounds = array<i64: 7>}, {transform_indices = @transform_10, window_bounds = array<i64: 2, 8, 256>}]} {
    %c0_i32 = arith.constant 0 : i32
    %0 = arith.cmpi eq, %arg0, %c0_i32 : i32
    %c0_i32_0 = arith.constant 0 : i32
    %1 = arith.cmpi eq, %arg1, %c0_i32_0 : i32
    %2 = arith.andi %0, %1 : i1
    %3 = arith.extui %2 : i1 to i32
    %c0_i32_1 = arith.constant 0 : i32
    %4 = arith.cmpi ne, %3, %c0_i32_1 : i32
    scf.if %4 {
      %cst = arith.constant 0.000000e+00 : f32
      %16 = vector.broadcast %cst : f32 to vector<8x1xf32>
      %c0 = arith.constant 0 : index
      %c0_8 = arith.constant 0 : index
      %17 = vector.load %arg13[%c0, %c0_8] : memref<8x1xf32, #tpu.memory_space<vmem>>, vector<8x1xf32>
      tpu.vector_store %arg13[%c0, %c0_8], %16 {strides = array<i32>} : memref<8x1xf32, #tpu.memory_space<vmem>>, vector<8x1xf32>,
      %cst_9 = arith.constant 0.000000e+00 : f32
      %18 = vector.broadcast %cst_9 : f32 to vector<8x1xf32>
      %c0_10 = arith.constant 0 : index
      %c0_11 = arith.constant 0 : index
      %19 = vector.load %arg14[%c0_10, %c0_11] : memref<8x1xf32, #tpu.memory_space<vmem>>, vector<8x1xf32>
      tpu.vector_store %arg14[%c0_10, %c0_11], %18 {strides = array<i32>} : memref<8x1xf32, #tpu.memory_space<vmem>>, vector<8x1xf32>,
    } else {
    }
    %c0_i32_2 = arith.constant 0 : i32
    %5 = arith.cmpi eq, %arg0, %c0_i32_2 : i32
    %6 = arith.extui %5 : i1 to i32
    %c0_i32_3 = arith.constant 0 : i32
    %7 = arith.cmpi ne, %6, %c0_i32_3 : i32
    scf.if %7 {
      %c0 = arith.constant 0 : index
      %c0_8 = arith.constant 0 : index
      %16 = vector.load %arg3[%c0, %c0_8] : memref<8x8xf32, #tpu.memory_space<vmem>>, vector<8x8xf32>
      %c0_9 = arith.constant 0 : index
      %c0_10 = arith.constant 0 : index
      %17 = vector.load %arg4[%c0_9, %c0_10] : memref<8x1xf32, #tpu.memory_space<vmem>>, vector<8x1xf32>
      %cst = arith.constant 0.000000e+00 : f32
      %18 = vector.broadcast %cst : f32 to vector<8x1xf32>
      %cst_11 = arith.constant 0.000000e+00 : f32
      %19 = vector.broadcast %cst_11 : f32 to vector<8x1xf32>
      %c0_12 = arith.constant 0 : index
      %c0_13 = arith.constant 0 : index
      %c0_14 = arith.constant 0 : index
      %20 = vector.load %arg2[%c0_12, %c0_13, %c0_14] : memref<2x8x256xf32, #tpu.memory_space<vmem>>, vector<1x8x256xf32>
      %21 = vector.shape_cast %20 : vector<1x8x256xf32> to vector<8x256xf32>
      %cst_15 = arith.constant dense<0.000000e+00> : vector<8x256xf32>
      %22 = tpu.matmul %16, %21, %cst_15 {dimension_numbers = #tpu.dot_dimension_numbers<[1], [0], [0], [1], [0, 0, 1, 1], [], []>} : vector<8x8xf32>, vector<8x256xf32>, vector<8x256xf32> -> vector<8x256xf32>
      %23 = vector.broadcast %17 : vector<8x1xf32> to vector<8x256xf32>
      %24 = arith.addf %22, %23 : vector<8x256xf32>
      %cst_16 = arith.constant dense<0.000000e+00> : vector<8xf32>
      %25 = vector.multi_reduction <add>, %24, %cst_16 [1] : vector<8x256xf32> to vector<8xf32>
      %26 = vector.shape_cast %25 : vector<8xf32> to vector<8x1xf32>
      %27 = arith.addf %18, %26 : vector<8x1xf32>
      %28 = arith.mulf %24, %24 : vector<8x256xf32>
      %cst_17 = arith.constant dense<0.000000e+00> : vector<8xf32>
      %29 = vector.multi_reduction <add>, %28, %cst_17 [1] : vector<8x256xf32> to vector<8xf32>
      %30 = vector.shape_cast %29 : vector<8xf32> to vector<8x1xf32>
      %31 = arith.addf %19, %30 : vector<8x1xf32>
      %c1 = arith.constant 1 : index
      %c0_18 = arith.constant 0 : index
      %c0_19 = arith.constant 0 : index
      %32 = vector.load %arg2[%c1, %c0_18, %c0_19] : memref<2x8x256xf32, #tpu.memory_space<vmem>>, vector<1x8x256xf32>
      %33 = vector.shape_cast %32 : vector<1x8x256xf32> to vector<8x256xf32>
      %cst_20 = arith.constant dense<0.000000e+00> : vector<8x256xf32>
      %34 = tpu.matmul %16, %33, %cst_20 {dimension_numbers = #tpu.dot_dimension_numbers<[1], [0], [0], [1], [0, 0, 1, 1], [], []>} : vector<8x8xf32>, vector<8x256xf32>, vector<8x256xf32> -> vector<8x256xf32>
      %35 = vector.broadcast %17 : vector<8x1xf32> to vector<8x256xf32>
      %36 = arith.addf %34, %35 : vector<8x256xf32>
      %cst_21 = arith.constant dense<0.000000e+00> : vector<8xf32>
      %37 = vector.multi_reduction <add>, %36, %cst_21 [1] : vector<8x256xf32> to vector<8xf32>
      %38 = vector.shape_cast %37 : vector<8xf32> to vector<8x1xf32>
      %39 = arith.addf %27, %38 : vector<8x1xf32>
      %40 = arith.mulf %36, %36 : vector<8x256xf32>
      %cst_22 = arith.constant dense<0.000000e+00> : vector<8xf32>
      %41 = vector.multi_reduction <add>, %40, %cst_22 [1] : vector<8x256xf32> to vector<8xf32>
      %42 = vector.shape_cast %41 : vector<8xf32> to vector<8x1xf32>
      %43 = arith.addf %31, %42 : vector<8x1xf32>
      %c0_23 = arith.constant 0 : index
      %c0_24 = arith.constant 0 : index
      %44 = vector.load %arg13[%c0_23, %c0_24] : memref<8x1xf32, #tpu.memory_space<vmem>>, vector<8x1xf32>
      %45 = arith.addf %44, %39 : vector<8x1xf32>
      %c0_25 = arith.constant 0 : index
      %c0_26 = arith.constant 0 : index
      %46 = vector.load %arg13[%c0_25, %c0_26] : memref<8x1xf32, #tpu.memory_space<vmem>>, vector<8x1xf32>
      tpu.vector_store %arg13[%c0_25, %c0_26], %45 {strides = array<i32>} : memref<8x1xf32, #tpu.memory_space<vmem>>, vector<8x1xf32>,
      %c0_27 = arith.constant 0 : index
      %c0_28 = arith.constant 0 : index
      %47 = vector.load %arg14[%c0_27, %c0_28] : memref<8x1xf32, #tpu.memory_space<vmem>>, vector<8x1xf32>
      %48 = arith.addf %47, %43 : vector<8x1xf32>
      %c0_29 = arith.constant 0 : index
      %c0_30 = arith.constant 0 : index
      %49 = vector.load %arg14[%c0_29, %c0_30] : memref<8x1xf32, #tpu.memory_space<vmem>>, vector<8x1xf32>
      tpu.vector_store %arg14[%c0_29, %c0_30], %48 {strides = array<i32>} : memref<8x1xf32, #tpu.memory_space<vmem>>, vector<8x1xf32>,
    } else {
    }
    %c0_i32_4 = arith.constant 0 : i32
    %8 = arith.cmpi eq, %arg0, %c0_i32_4 : i32
    %c0_i32_5 = arith.constant 0 : i32
    %9 = arith.cmpi eq, %arg1, %c0_i32_5 : i32
    %10 = arith.andi %8, %9 : i1
    %11 = arith.extui %10 : i1 to i32
    %c0_i32_6 = arith.constant 0 : i32
    %12 = arith.cmpi ne, %11, %c0_i32_6 : i32
    scf.if %12 {
      %c6 = arith.constant 6 : index
      %16 = memref.load %arg11[%c6] : memref<7xf32, #tpu.memory_space<smem>>
      %c0 = arith.constant 0 : index
      %c0_8 = arith.constant 0 : index
      %17 = vector.load %arg13[%c0, %c0_8] : memref<8x1xf32, #tpu.memory_space<vmem>>, vector<8x1xf32>
      %cst = arith.constant 0.001953125 : f32
      %18 = vector.broadcast %cst : f32 to vector<8x1xf32>
      %19 = arith.mulf %17, %18 : vector<8x1xf32>
      %c0_9 = arith.constant 0 : index
      %c0_10 = arith.constant 0 : index
      %20 = vector.load %arg14[%c0_9, %c0_10] : memref<8x1xf32, #tpu.memory_space<vmem>>, vector<8x1xf32>
      %cst_11 = arith.constant 0.001953125 : f32
      %21 = vector.broadcast %cst_11 : f32 to vector<8x1xf32>
      %22 = arith.mulf %20, %21 : vector<8x1xf32>
      %23 = arith.mulf %19, %19 : vector<8x1xf32>
      %24 = arith.subf %22, %23 : vector<8x1xf32>
      %c0_12 = arith.constant 0 : index
      %c0_13 = arith.constant 0 : index
      %25 = vector.load %arg5[%c0_12, %c0_13] : memref<8x1xf32, #tpu.memory_space<vmem>>, vector<8x1xf32>
      %26 = vector.broadcast %16 : f32 to vector<8x1xf32>
      %27 = arith.addf %24, %26 : vector<8x1xf32>
      %28 = math.rsqrt %27 : vector<8x1xf32>
      %29 = arith.mulf %25, %28 : vector<8x1xf32>
      %c0_14 = arith.constant 0 : index
      %c0_15 = arith.constant 0 : index
      %30 = vector.load %arg6[%c0_14, %c0_15] : memref<8x1xf32, #tpu.memory_space<vmem>>, vector<8x1xf32>
      %31 = arith.mulf %19, %29 : vector<8x1xf32>
      %32 = arith.subf %30, %31 : vector<8x1xf32>
      %c0_16 = arith.constant 0 : index
      %c0_17 = arith.constant 0 : index
      %33 = vector.load %arg3[%c0_16, %c0_17] : memref<8x8xf32, #tpu.memory_space<vmem>>, vector<8x8xf32>
      %34 = vector.broadcast %29 : vector<8x1xf32> to vector<8x8xf32>
      %35 = arith.mulf %34, %33 : vector<8x8xf32>
      %c0_18 = arith.constant 0 : index
      %c0_19 = arith.constant 0 : index
      %36 = vector.load %arg15[%c0_18, %c0_19] : memref<8x8xf32, #tpu.memory_space<vmem>>, vector<8x8xf32>
      tpu.vector_store %arg15[%c0_18, %c0_19], %35 {strides = array<i32>} : memref<8x8xf32, #tpu.memory_space<vmem>>, vector<8x8xf32>,
      %c0_20 = arith.constant 0 : index
      %c0_21 = arith.constant 0 : index
      %37 = vector.load %arg4[%c0_20, %c0_21] : memref<8x1xf32, #tpu.memory_space<vmem>>, vector<8x1xf32>
      %38 = arith.mulf %29, %37 : vector<8x1xf32>
      %39 = arith.addf %38, %32 : vector<8x1xf32>
      %c0_22 = arith.constant 0 : index
      %c0_23 = arith.constant 0 : index
      %40 = vector.load %arg16[%c0_22, %c0_23] : memref<8x1xf32, #tpu.memory_space<vmem>>, vector<8x1xf32>
      tpu.vector_store %arg16[%c0_22, %c0_23], %39 {strides = array<i32>} : memref<8x1xf32, #tpu.memory_space<vmem>>, vector<8x1xf32>,
    } else {
    }
    %c1_i32 = arith.constant 1 : i32
    %13 = arith.cmpi eq, %arg0, %c1_i32 : i32
    %14 = arith.extui %13 : i1 to i32
    %c0_i32_7 = arith.constant 0 : i32
    %15 = arith.cmpi ne, %14, %c0_i32_7 : i32
    scf.if %15 {
      %c0 = arith.constant 0 : index
      %16 = memref.load %arg11[%c0] : memref<7xf32, #tpu.memory_space<smem>>
      %c1 = arith.constant 1 : index
      %17 = memref.load %arg11[%c1] : memref<7xf32, #tpu.memory_space<smem>>
      %c2 = arith.constant 2 : index
      %18 = memref.load %arg11[%c2] : memref<7xf32, #tpu.memory_space<smem>>
      %c3 = arith.constant 3 : index
      %19 = memref.load %arg11[%c3] : memref<7xf32, #tpu.memory_space<smem>>
      %c4 = arith.constant 4 : index
      %20 = memref.load %arg11[%c4] : memref<7xf32, #tpu.memory_space<smem>>
      %c5 = arith.constant 5 : index
      %21 = memref.load %arg11[%c5] : memref<7xf32, #tpu.memory_space<smem>>
      %c0_8 = arith.constant 0 : index
      %c0_9 = arith.constant 0 : index
      %22 = vector.load %arg15[%c0_8, %c0_9] : memref<8x8xf32, #tpu.memory_space<vmem>>, vector<8x8xf32>
      %c0_10 = arith.constant 0 : index
      %c0_11 = arith.constant 0 : index
      %23 = vector.load %arg16[%c0_10, %c0_11] : memref<8x1xf32, #tpu.memory_space<vmem>>, vector<8x1xf32>
      %c0_12 = arith.constant 0 : index
      %c0_13 = arith.constant 0 : index
      %24 = vector.load %arg7[%c0_12, %c0_13] : memref<8x4xf32, #tpu.memory_space<vmem>>, vector<8x4xf32>
      %c0_14 = arith.constant 0 : index
      %c0_15 = arith.constant 0 : index
      %25 = vector.load %arg8[%c0_14, %c0_15] : memref<1x4xf32, #tpu.memory_space<vmem>>, vector<1x4xf32>
      %c0_16 = arith.constant 0 : index
      %c0_17 = arith.constant 0 : index
      %26 = vector.load %arg9[%c0_16, %c0_17] : memref<8x4xf32, #tpu.memory_space<vmem>>, vector<8x4xf32>
      %c0_18 = arith.constant 0 : index
      %c0_19 = arith.constant 0 : index
      %27 = vector.load %arg10[%c0_18, %c0_19] : memref<8x1xf32, #tpu.memory_space<vmem>>, vector<8x1xf32>
      %c0_20 = arith.constant 0 : index
      %c0_21 = arith.constant 0 : index
      %c0_22 = arith.constant 0 : index
      %28 = vector.load %arg2[%c0_20, %c0_21, %c0_22] : memref<2x8x256xf32, #tpu.memory_space<vmem>>, vector<1x8x256xf32>
      %29 = vector.shape_cast %28 : vector<1x8x256xf32> to vector<8x256xf32>
      %cst = arith.constant dense<0.000000e+00> : vector<8x256xf32>
      %30 = tpu.matmul %22, %29, %cst {dimension_numbers = #tpu.dot_dimension_numbers<[1], [0], [0], [1], [0, 0, 1, 1], [], []>} : vector<8x8xf32>, vector<8x256xf32>, vector<8x256xf32> -> vector<8x256xf32>
      %31 = vector.broadcast %23 : vector<8x1xf32> to vector<8x256xf32>
      %32 = arith.addf %30, %31 : vector<8x256xf32>
      %cst_23 = arith.constant 5.000000e-01 : f32
      %33 = vector.broadcast %cst_23 : f32 to vector<8x256xf32>
      %34 = arith.mulf %33, %32 : vector<8x256xf32>
      %35 = math.tanh %34 : vector<8x256xf32>
      %cst_24 = arith.constant 1.000000e+00 : f32
      %36 = vector.broadcast %cst_24 : f32 to vector<8x256xf32>
      %37 = arith.addf %35, %36 : vector<8x256xf32>
      %cst_25 = arith.constant 5.000000e-01 : f32
      %38 = vector.broadcast %cst_25 : f32 to vector<8x256xf32>
      %39 = arith.mulf %38, %37 : vector<8x256xf32>
      %40 = vector.broadcast %17 : f32 to vector<8x256xf32>
      %41 = arith.mulf %40, %32 : vector<8x256xf32>
      %42 = math.sin %41 : vector<8x256xf32>
      %43 = vector.broadcast %16 : f32 to vector<8x256xf32>
      %44 = arith.mulf %43, %42 : vector<8x256xf32>
      %45 = arith.addf %32, %44 : vector<8x256xf32>
      %46 = arith.mulf %39, %45 : vector<8x256xf32>
      %cst_26 = arith.constant dense<0.000000e+00> : vector<8xf32>
      %47 = vector.multi_reduction <add>, %46, %cst_26 [1] : vector<8x256xf32> to vector<8xf32>
      %48 = vector.shape_cast %47 : vector<8xf32> to vector<8x1xf32>
      %cst_27 = arith.constant 3.906250e-03 : f32
      %49 = vector.broadcast %cst_27 : f32 to vector<8x1xf32>
      %50 = arith.mulf %48, %49 : vector<8x1xf32>
      %51 = vector.broadcast %50 : vector<8x1xf32> to vector<8x4xf32>
      %52 = arith.mulf %24, %51 : vector<8x4xf32>
      %cst_28 = arith.constant dense<0.000000e+00> : vector<4xf32>
      %53 = vector.multi_reduction <add>, %52, %cst_28 [0] : vector<8x4xf32> to vector<4xf32>
      %54 = vector.shape_cast %53 : vector<4xf32> to vector<1x4xf32>
      %55 = arith.addf %54, %25 : vector<1x4xf32>
      %cst_29 = arith.constant 5.000000e-01 : f32
      %56 = vector.broadcast %cst_29 : f32 to vector<1x4xf32>
      %57 = arith.mulf %56, %55 : vector<1x4xf32>
      %58 = math.tanh %57 : vector<1x4xf32>
      %cst_30 = arith.constant 1.000000e+00 : f32
      %59 = vector.broadcast %cst_30 : f32 to vector<1x4xf32>
      %60 = arith.addf %58, %59 : vector<1x4xf32>
      %cst_31 = arith.constant 5.000000e-01 : f32
      %61 = vector.broadcast %cst_31 : f32 to vector<1x4xf32>
      %62 = arith.mulf %61, %60 : vector<1x4xf32>
      %63 = vector.broadcast %19 : f32 to vector<1x4xf32>
      %64 = arith.mulf %63, %55 : vector<1x4xf32>
      %65 = math.sin %64 : vector<1x4xf32>
      %66 = vector.broadcast %18 : f32 to vector<1x4xf32>
      %67 = arith.mulf %66, %65 : vector<1x4xf32>
      %68 = arith.addf %55, %67 : vector<1x4xf32>
      %69 = arith.mulf %62, %68 : vector<1x4xf32>
      %70 = vector.broadcast %69 : vector<1x4xf32> to vector<8x4xf32>
      %71 = arith.mulf %26, %70 : vector<8x4xf32>
      %cst_32 = arith.constant dense<0.000000e+00> : vector<8xf32>
      %72 = vector.multi_reduction <add>, %71, %cst_32 [1] : vector<8x4xf32> to vector<8xf32>
      %73 = vector.shape_cast %72 : vector<8xf32> to vector<8x1xf32>
      %74 = arith.addf %73, %27 : vector<8x1xf32>
      %cst_33 = arith.constant 5.000000e-01 : f32
      %75 = vector.broadcast %cst_33 : f32 to vector<8x1xf32>
      %76 = arith.mulf %75, %74 : vector<8x1xf32>
      %77 = math.tanh %76 : vector<8x1xf32>
      %cst_34 = arith.constant 1.000000e+00 : f32
      %78 = vector.broadcast %cst_34 : f32 to vector<8x1xf32>
      %79 = arith.addf %77, %78 : vector<8x1xf32>
      %cst_35 = arith.constant 5.000000e-01 : f32
      %80 = vector.broadcast %cst_35 : f32 to vector<8x1xf32>
      %81 = arith.mulf %80, %79 : vector<8x1xf32>
      %82 = vector.broadcast %81 : vector<8x1xf32> to vector<8x256xf32>
      %83 = arith.mulf %46, %82 : vector<8x256xf32>
      %84 = arith.addf %83, %29 : vector<8x256xf32>
      %cst_36 = arith.constant 5.000000e-01 : f32
      %85 = vector.broadcast %cst_36 : f32 to vector<8x256xf32>
      %86 = arith.mulf %85, %84 : vector<8x256xf32>
      %87 = math.tanh %86 : vector<8x256xf32>
      %cst_37 = arith.constant 1.000000e+00 : f32
      %88 = vector.broadcast %cst_37 : f32 to vector<8x256xf32>
      %89 = arith.addf %87, %88 : vector<8x256xf32>
      %cst_38 = arith.constant 5.000000e-01 : f32
      %90 = vector.broadcast %cst_38 : f32 to vector<8x256xf32>
      %91 = arith.mulf %90, %89 : vector<8x256xf32>
      %92 = vector.broadcast %21 : f32 to vector<8x256xf32>
      %93 = arith.mulf %92, %84 : vector<8x256xf32>
      %94 = math.sin %93 : vector<8x256xf32>
      %95 = vector.broadcast %20 : f32 to vector<8x256xf32>
      %96 = arith.mulf %95, %94 : vector<8x256xf32>
      %97 = arith.addf %84, %96 : vector<8x256xf32>
      %98 = arith.mulf %91, %97 : vector<8x256xf32>
      %c0_39 = arith.constant 0 : index
      %c0_40 = arith.constant 0 : index
      %c0_41 = arith.constant 0 : index
      %99 = vector.load %arg12[%c0_39, %c0_40, %c0_41] : memref<2x8x256xf32, #tpu.memory_space<vmem>>, vector<1x8x256xf32>
      %100 = vector.shape_cast %99 : vector<1x8x256xf32> to vector<8x256xf32>
      %101 = vector.shape_cast %98 : vector<8x256xf32> to vector<1x8x256xf32>
      tpu.vector_store %arg12[%c0_39, %c0_40, %c0_41], %101 {strides = array<i32>} : memref<2x8x256xf32, #tpu.memory_space<vmem>>, vector<1x8x256xf32>,
      %c1_42 = arith.constant 1 : index
      %c0_43 = arith.constant 0 : index
      %c0_44 = arith.constant 0 : index
      %102 = vector.load %arg2[%c1_42, %c0_43, %c0_44] : memref<2x8x256xf32, #tpu.memory_space<vmem>>, vector<1x8x256xf32>
      %103 = vector.shape_cast %102 : vector<1x8x256xf32> to vector<8x256xf32>
      %cst_45 = arith.constant dense<0.000000e+00> : vector<8x256xf32>
      %104 = tpu.matmul %22, %103, %cst_45 {dimension_numbers = #tpu.dot_dimension_numbers<[1], [0], [0], [1], [0, 0, 1, 1], [], []>} : vector<8x8xf32>, vector<8x256xf32>, vector<8x256xf32> -> vector<8x256xf32>
      %105 = vector.broadcast %23 : vector<8x1xf32> to vector<8x256xf32>
      %106 = arith.addf %104, %105 : vector<8x256xf32>
      %cst_46 = arith.constant 5.000000e-01 : f32
      %107 = vector.broadcast %cst_46 : f32 to vector<8x256xf32>
      %108 = arith.mulf %107, %106 : vector<8x256xf32>
      %109 = math.tanh %108 : vector<8x256xf32>
      %cst_47 = arith.constant 1.000000e+00 : f32
      %110 = vector.broadcast %cst_47 : f32 to vector<8x256xf32>
      %111 = arith.addf %109, %110 : vector<8x256xf32>
      %cst_48 = arith.constant 5.000000e-01 : f32
      %112 = vector.broadcast %cst_48 : f32 to vector<8x256xf32>
      %113 = arith.mulf %112, %111 : vector<8x256xf32>
      %114 = vector.broadcast %17 : f32 to vector<8x256xf32>
      %115 = arith.mulf %114, %106 : vector<8x256xf32>
      %116 = math.sin %115 : vector<8x256xf32>
      %117 = vector.broadcast %16 : f32 to vector<8x256xf32>
      %118 = arith.mulf %117, %116 : vector<8x256xf32>
      %119 = arith.addf %106, %118 : vector<8x256xf32>
      %120 = arith.mulf %113, %119 : vector<8x256xf32>
      %cst_49 = arith.constant dense<0.000000e+00> : vector<8xf32>
      %121 = vector.multi_reduction <add>, %120, %cst_49 [1] : vector<8x256xf32> to vector<8xf32>
      %122 = vector.shape_cast %121 : vector<8xf32> to vector<8x1xf32>
      %cst_50 = arith.constant 3.906250e-03 : f32
      %123 = vector.broadcast %cst_50 : f32 to vector<8x1xf32>
      %124 = arith.mulf %122, %123 : vector<8x1xf32>
      %125 = vector.broadcast %124 : vector<8x1xf32> to vector<8x4xf32>
      %126 = arith.mulf %24, %125 : vector<8x4xf32>
      %cst_51 = arith.constant dense<0.000000e+00> : vector<4xf32>
      %127 = vector.multi_reduction <add>, %126, %cst_51 [0] : vector<8x4xf32> to vector<4xf32>
      %128 = vector.shape_cast %127 : vector<4xf32> to vector<1x4xf32>
      %129 = arith.addf %128, %25 : vector<1x4xf32>
      %cst_52 = arith.constant 5.000000e-01 : f32
      %130 = vector.broadcast %cst_52 : f32 to vector<1x4xf32>
      %131 = arith.mulf %130, %129 : vector<1x4xf32>
      %132 = math.tanh %131 : vector<1x4xf32>
      %cst_53 = arith.constant 1.000000e+00 : f32
      %133 = vector.broadcast %cst_53 : f32 to vector<1x4xf32>
      %134 = arith.addf %132, %133 : vector<1x4xf32>
      %cst_54 = arith.constant 5.000000e-01 : f32
      %135 = vector.broadcast %cst_54 : f32 to vector<1x4xf32>
      %136 = arith.mulf %135, %134 : vector<1x4xf32>
      %137 = vector.broadcast %19 : f32 to vector<1x4xf32>
      %138 = arith.mulf %137, %129 : vector<1x4xf32>
      %139 = math.sin %138 : vector<1x4xf32>
      %140 = vector.broadcast %18 : f32 to vector<1x4xf32>
      %141 = arith.mulf %140, %139 : vector<1x4xf32>
      %142 = arith.addf %129, %141 : vector<1x4xf32>
      %143 = arith.mulf %136, %142 : vector<1x4xf32>
      %144 = vector.broadcast %143 : vector<1x4xf32> to vector<8x4xf32>
      %145 = arith.mulf %26, %144 : vector<8x4xf32>
      %cst_55 = arith.constant dense<0.000000e+00> : vector<8xf32>
      %146 = vector.multi_reduction <add>, %145, %cst_55 [1] : vector<8x4xf32> to vector<8xf32>
      %147 = vector.shape_cast %146 : vector<8xf32> to vector<8x1xf32>
      %148 = arith.addf %147, %27 : vector<8x1xf32>
      %cst_56 = arith.constant 5.000000e-01 : f32
      %149 = vector.broadcast %cst_56 : f32 to vector<8x1xf32>
      %150 = arith.mulf %149, %148 : vector<8x1xf32>
      %151 = math.tanh %150 : vector<8x1xf32>
      %cst_57 = arith.constant 1.000000e+00 : f32
      %152 = vector.broadcast %cst_57 : f32 to vector<8x1xf32>
      %153 = arith.addf %151, %152 : vector<8x1xf32>
      %cst_58 = arith.constant 5.000000e-01 : f32
      %154 = vector.broadcast %cst_58 : f32 to vector<8x1xf32>
      %155 = arith.mulf %154, %153 : vector<8x1xf32>
      %156 = vector.broadcast %155 : vector<8x1xf32> to vector<8x256xf32>
      %157 = arith.mulf %120, %156 : vector<8x256xf32>
      %158 = arith.addf %157, %103 : vector<8x256xf32>
      %cst_59 = arith.constant 5.000000e-01 : f32
      %159 = vector.broadcast %cst_59 : f32 to vector<8x256xf32>
      %160 = arith.mulf %159, %158 : vector<8x256xf32>
      %161 = math.tanh %160 : vector<8x256xf32>
      %cst_60 = arith.constant 1.000000e+00 : f32
      %162 = vector.broadcast %cst_60 : f32 to vector<8x256xf32>
      %163 = arith.addf %161, %162 : vector<8x256xf32>
      %cst_61 = arith.constant 5.000000e-01 : f32
      %164 = vector.broadcast %cst_61 : f32 to vector<8x256xf32>
      %165 = arith.mulf %164, %163 : vector<8x256xf32>
      %166 = vector.broadcast %21 : f32 to vector<8x256xf32>
      %167 = arith.mulf %166, %158 : vector<8x256xf32>
      %168 = math.sin %167 : vector<8x256xf32>
      %169 = vector.broadcast %20 : f32 to vector<8x256xf32>
      %170 = arith.mulf %169, %168 : vector<8x256xf32>
      %171 = arith.addf %158, %170 : vector<8x256xf32>
      %172 = arith.mulf %165, %171 : vector<8x256xf32>
      %c1_62 = arith.constant 1 : index
      %c0_63 = arith.constant 0 : index
      %c0_64 = arith.constant 0 : index
      %173 = vector.load %arg12[%c1_62, %c0_63, %c0_64] : memref<2x8x256xf32, #tpu.memory_space<vmem>>, vector<1x8x256xf32>
      %174 = vector.shape_cast %173 : vector<1x8x256xf32> to vector<8x256xf32>
      %175 = vector.shape_cast %172 : vector<8x256xf32> to vector<1x8x256xf32>
      tpu.vector_store %arg12[%c1_62, %c0_63, %c0_64], %175 {strides = array<i32>} : memref<2x8x256xf32, #tpu.memory_space<vmem>>, vector<1x8x256xf32>,
    } else {
    }
    return
  }
  func.func @transform_0(%arg0: i32, %arg1: i32) -> (i32, i32, i32) {
    %c0_i32 = arith.constant 0 : i32
    %c0_i32_0 = arith.constant 0 : i32
    %c0_i32_1 = arith.constant 0 : i32
    return %arg1, %c0_i32, %c0_i32_0 : i32, i32, i32
  }
  func.func @transform_1(%arg0: i32, %arg1: i32) -> (i32, i32) {
    %c0_i32 = arith.constant 0 : i32
    %c0_i32_0 = arith.constant 0 : i32
    %c0_i32_1 = arith.constant 0 : i32
    return %c0_i32, %c0_i32_0 : i32, i32
  }
  func.func @transform_2(%arg0: i32, %arg1: i32) -> (i32, i32) {
    %c0_i32 = arith.constant 0 : i32
    %c0_i32_0 = arith.constant 0 : i32
    %c0_i32_1 = arith.constant 0 : i32
    return %c0_i32, %c0_i32_0 : i32, i32
  }
  func.func @transform_3(%arg0: i32, %arg1: i32) -> (i32, i32) {
    %c0_i32 = arith.constant 0 : i32
    %c0_i32_0 = arith.constant 0 : i32
    %c0_i32_1 = arith.constant 0 : i32
    return %c0_i32, %c0_i32_0 : i32, i32
  }
  func.func @transform_4(%arg0: i32, %arg1: i32) -> (i32, i32) {
    %c0_i32 = arith.constant 0 : i32
    %c0_i32_0 = arith.constant 0 : i32
    %c0_i32_1 = arith.constant 0 : i32
    return %c0_i32, %c0_i32_0 : i32, i32
  }
  func.func @transform_5(%arg0: i32, %arg1: i32) -> (i32, i32) {
    %c0_i32 = arith.constant 0 : i32
    %c0_i32_0 = arith.constant 0 : i32
    %c0_i32_1 = arith.constant 0 : i32
    return %c0_i32, %c0_i32_0 : i32, i32
  }
  func.func @transform_6(%arg0: i32, %arg1: i32) -> (i32, i32) {
    %c0_i32 = arith.constant 0 : i32
    %c0_i32_0 = arith.constant 0 : i32
    %c0_i32_1 = arith.constant 0 : i32
    return %c0_i32, %c0_i32_0 : i32, i32
  }
  func.func @transform_7(%arg0: i32, %arg1: i32) -> (i32, i32) {
    %c0_i32 = arith.constant 0 : i32
    %c0_i32_0 = arith.constant 0 : i32
    %c0_i32_1 = arith.constant 0 : i32
    return %c0_i32, %c0_i32_0 : i32, i32
  }
  func.func @transform_8(%arg0: i32, %arg1: i32) -> (i32, i32) {
    %c0_i32 = arith.constant 0 : i32
    %c0_i32_0 = arith.constant 0 : i32
    %c0_i32_1 = arith.constant 0 : i32
    return %c0_i32, %c0_i32_0 : i32, i32
  }
  func.func @transform_9(%arg0: i32, %arg1: i32) -> i32 {
    %c0_i32 = arith.constant 0 : i32
    %c0_i32_0 = arith.constant 0 : i32
    return %c0_i32 : i32
  }
  func.func @transform_10(%arg0: i32, %arg1: i32) -> (i32, i32, i32) {
    %0 = arith.muli %arg0, %arg1 : i32
    %c0_i32 = arith.constant 0 : i32
    %c0_i32_0 = arith.constant 0 : i32
    %c0_i32_1 = arith.constant 0 : i32
    return %0, %c0_i32, %c0_i32_0 : i32, i32, i32
  }
}

</mosaic_0001>

<llo_original>
// kernel: tpu_custom_call.1
$region0: #{tpu_custom_call.1}
  #allocation0 [shape = 'u32[]', space=smem, size = 0x4, offset = 0x4, fixed_abs, tag = 'smem constant byte address 0x4 - core index']
  #allocation1 [shape = 'u32[144,128]{1,0:T(1,128)}', space=vmem, size = 0x12000, scoped, tag = 'internal scratch']
  #allocation2 [shape = 'f32[8,1]{1,0:T(8,128)}', space=vmem, size = 0x1000, scoped, tag = 'scratch operand']
  #allocation3 [shape = 'f32[8,1]{1,0:T(8,128)}', space=vmem, size = 0x1000, scoped, tag = 'scratch operand']
  #allocation4 [shape = 'f32[8,8]{1,0:T(8,128)}', space=vmem, size = 0x1000, scoped, tag = 'scratch operand']
  #allocation5 [shape = 'f32[8,1]{1,0:T(8,128)}', space=vmem, size = 0x1000, scoped, tag = 'scratch operand']
  %s0 = inlined_call_operand.vmem [shape: f32[2,8,256], index: 0, kind: input, shape index: {}]
  %s1 = inlined_call_operand.vmem [shape: f32[8,8], index: 1, kind: input, shape index: {}]
  %s2 = inlined_call_operand.vmem [shape: f32[8,1], index: 2, kind: input, shape index: {}]
  %s3 = inlined_call_operand.vmem [shape: f32[8,1], index: 3, kind: input, shape index: {}]
  %s4 = inlined_call_operand.vmem [shape: f32[8,1], index: 4, kind: input, shape index: {}]
  %s5 = inlined_call_operand.vmem [shape: f32[8,4], index: 5, kind: input, shape index: {}]
  %s6 = inlined_call_operand.vmem [shape: f32[1,4], index: 6, kind: input, shape index: {}]
  %s7 = inlined_call_operand.vmem [shape: f32[8,4], index: 7, kind: input, shape index: {}]
  %s8 = inlined_call_operand.vmem [shape: f32[8,1], index: 8, kind: input, shape index: {}]
  %s9 = inlined_call_operand.vmem [shape: f32[7], index: 9, kind: input, shape index: {}]
  %s10 = inlined_call_operand.hbm [shape: f32[2,8,256], index: 10, kind: output, shape index: {}]
  %s11 = sld [smem:[#allocation0]]
  $region93: #{tpu_custom_call.1} parent=0
    _
  %s13 = ssub.s32 1, %s11
  %s14 = scalar_select 0, %s13, %s11
  $region1: #{tpu_custom_call.1} parent=0
    #allocation6 [shape = 'u8[512]{0}', space=smem, size = 0x200, scoped, tag = 'input window, operand 9, single buffered']
    #allocation7 [shape = 's32[2]{0}', space=sflag, size = 0x8, scoped, tag = 'scoped memory for tpu_custom_call.1']
    #allocation8 [shape = 's32[2]{0}', space=sflag, size = 0x8, scoped, tag = 'scoped memory for tpu_custom_call.1']
    #allocation9 [shape = 'u8[32768]{0}', space=vmem, size = 0x8000, scoped, tag = 'output window, operand 0']
    %15 = vsyncpa [#allocation8], 0
    %16 = vsyncpa [#allocation7], 0
    %s17 = scalar_lea.sflag [#allocation7], 1
    %18 = vsyncpa %s17, 0
    loop: start=0, step=1, limit=4
    $region2: #{tpu_custom_call.1} parent=1 // loop_pre_header
      _
    $region3: #{tpu_custom_call.1} parent=1 // loop_header
      %s20 = sphi 0, %s24
      %p21 = scmp.ge.s32.totalorder %s20, 4
      %s27 = sphi 0, %s39
      %s28 = sphi 0, %s35
      %s29 = sphi 0, %s27
      %s30 = sphi 0, %s28
      %s31 = sphi 0, %s29
      %s32 = sphi 0, %s30
      %s42 = sphi 0, %s44
      %s45 = sphi 0, %s42
      %s46 = sphi 0, %s45
      %s62 = sphi 0, %s46
      %s66 = sphi 0, %s66
      %s68 = sphi 0, %s66
      %s69 = sphi 0, %s68
      %s83 = sphi 0, %s69
      %s87 = sphi 0, %s87
      %s89 = sphi 0, %s87
      %s90 = sphi 0, %s89
      %s104 = sphi 0, %s90
      %s108 = sphi 0, %s108
      %s110 = sphi 0, %s108
      %s111 = sphi 0, %s110
      %s125 = sphi 0, %s111
      %s129 = sphi 0, %s129
      %s131 = sphi 0, %s129
      %s132 = sphi 0, %s131
      %s146 = sphi 0, %s132
      %s150 = sphi 0, %s150
      %s152 = sphi 0, %s150
      %s153 = sphi 0, %s152
      %s167 = sphi 0, %s153
      %s171 = sphi 0, %s171
      %s173 = sphi 0, %s171
      %s174 = sphi 0, %s173
      %s188 = sphi 0, %s174
      %s192 = sphi 0, %s192
      %s194 = sphi 0, %s192
      %s195 = sphi 0, %s194
      %s209 = sphi 0, %s195
      %s213 = sphi 0, %s213
      %s215 = sphi 0, %s213
      %s216 = sphi 0, %s215
      %s230 = sphi 0, %s216
      %s234 = sphi 0, %s234
      %s236 = sphi 0, %s234
      %s237 = sphi 0, %s236
      %s251 = sphi 0, %s237
      %s259 = sphi 0, %s261
      %s262 = sphi 0, %s259
      %s263 = sphi 0, %s262
      %s279 = sphi 0, %s263
    $region4: #{tpu_custom_call.1} parent=1 // loop_header_branch
      %23 = sbr.rel (%p21) target = $region8
    $region5: #{tpu_custom_call.1} parent=1 // loop_body
      %s25 = ssub.s32 %s20, 1
      %s26 = ssub.s32 %s20, 2
      %s33 = sadd.s32 1, %s28
      %p34 = scmp.ge.s32.totalorder %s33, 1
      %s35 = scalar_select %p34, 0, %s33
      %s36 = sadd.s32 1, %s27
      %s37 = scalar_select %p34, %s36, %s27
      %p38 = scmp.ge.s32.totalorder %s37, 2
      %s39 = scalar_select %p38, 0, %s37
      %s40 = ssub.s32 %s28, %s35
      %p41 = scmp.eq.s32.totalorder %s40, 0
      %s43 = sadd.s32 %s42, 1
      %s44 = scalar_select %p41, %s42, %s43
      %p47 = pneg %p41
      %p48 = scmp.eq.s32.totalorder %s20, 1
      %p49 = por %p47, %p48
      %p50 = scmp.ne.s32.totalorder %s42, %s45
      %p51 = scmp.eq.s32.totalorder %s20, 0
      %p52 = por %p50, %p51
      %p53 = scmp.ne.s32.totalorder %s42, %s45
      %p54 = scmp.eq.s32.totalorder %s25, 1
      %p55 = por %p53, %p54
      %p56 = scmp.ne.s32.totalorder %s45, %s46
      %p57 = scmp.eq.s32.totalorder %s25, 0
      %p58 = por %p56, %p57
      %p59 = scmp.ne.s32.totalorder %s45, %s46
      %p60 = scmp.eq.s32.totalorder %s26, 1
      %p61 = por %p59, %p60
      %p63 = scmp.ne.s32.totalorder %s46, %s62
      %p64 = scmp.eq.s32.totalorder %s26, 0
      %p65 = por %p63, %p64
      %s67 = sadd.s32 %s66, 1
      %p70 = scmp.eq.s32.totalorder %s20, 1
      %p71 = scmp.ne.s32.totalorder %s66, %s68
      %p72 = scmp.eq.s32.totalorder %s20, 0
      %p73 = por %p71, %p72
      %p74 = scmp.ne.s32.totalorder %s66, %s68
      %p75 = scmp.eq.s32.totalorder %s25, 1
      %p76 = por %p74, %p75
      %p77 = scmp.ne.s32.totalorder %s68, %s69
      %p78 = scmp.eq.s32.totalorder %s25, 0
      %p79 = por %p77, %p78
      %p80 = scmp.ne.s32.totalorder %s68, %s69
      %p81 = scmp.eq.s32.totalorder %s26, 1
      %p82 = por %p80, %p81
      %p84 = scmp.ne.s32.totalorder %s69, %s83
      %p85 = scmp.eq.s32.totalorder %s26, 0
      %p86 = por %p84, %p85
      %s88 = sadd.s32 %s87, 1
      %p91 = scmp.eq.s32.totalorder %s20, 1
      %p92 = scmp.ne.s32.totalorder %s87, %s89
      %p93 = scmp.eq.s32.totalorder %s20, 0
      %p94 = por %p92, %p93
      %p95 = scmp.ne.s32.totalorder %s87, %s89
      %p96 = scmp.eq.s32.totalorder %s25, 1
      %p97 = por %p95, %p96
      %p98 = scmp.ne.s32.totalorder %s89, %s90
      %p99 = scmp.eq.s32.totalorder %s25, 0
      %p100 = por %p98, %p99
      %p101 = scmp.ne.s32.totalorder %s89, %s90
      %p102 = scmp.eq.s32.totalorder %s26, 1
      %p103 = por %p101, %p102
      %p105 = scmp.ne.s32.totalorder %s90, %s104
      %p106 = scmp.eq.s32.totalorder %s26, 0
      %p107 = por %p105, %p106
      %s109 = sadd.s32 %s108, 1
      %p112 = scmp.eq.s32.totalorder %s20, 1
      %p113 = scmp.ne.s32.totalorder %s108, %s110
      %p114 = scmp.eq.s32.totalorder %s20, 0
      %p115 = por %p113, %p114
      %p116 = scmp.ne.s32.totalorder %s108, %s110
      %p117 = scmp.eq.s32.totalorder %s25, 1
      %p118 = por %p116, %p117
      %p119 = scmp.ne.s32.totalorder %s110, %s111
      %p120 = scmp.eq.s32.totalorder %s25, 0
      %p121 = por %p119, %p120
      %p122 = scmp.ne.s32.totalorder %s110, %s111
      %p123 = scmp.eq.s32.totalorder %s26, 1
      %p124 = por %p122, %p123
      %p126 = scmp.ne.s32.totalorder %s111, %s125
      %p127 = scmp.eq.s32.totalorder %s26, 0
      %p128 = por %p126, %p127
      %s130 = sadd.s32 %s129, 1
      %p133 = scmp.eq.s32.totalorder %s20, 1
      %p134 = scmp.ne.s32.totalorder %s129, %s131
      %p135 = scmp.eq.s32.totalorder %s20, 0
      %p136 = por %p134, %p135
      %p137 = scmp.ne.s32.totalorder %s129, %s131
      %p138 = scmp.eq.s32.totalorder %s25, 1
      %p139 = por %p137, %p138
      %p140 = scmp.ne.s32.totalorder %s131, %s132
      %p141 = scmp.eq.s32.totalorder %s25, 0
      %p142 = por %p140, %p141
      %p143 = scmp.ne.s32.totalorder %s131, %s132
      %p144 = scmp.eq.s32.totalorder %s26, 1
      %p145 = por %p143, %p144
      %p147 = scmp.ne.s32.totalorder %s132, %s146
      %p148 = scmp.eq.s32.totalorder %s26, 0
      %p149 = por %p147, %p148
      %s151 = sadd.s32 %s150, 1
      %p154 = scmp.eq.s32.totalorder %s20, 1
      %p155 = scmp.ne.s32.totalorder %s150, %s152
      %p156 = scmp.eq.s32.totalorder %s20, 0
      %p157 = por %p155, %p156
      %p158 = scmp.ne.s32.totalorder %s150, %s152
      %p159 = scmp.eq.s32.totalorder %s25, 1
      %p160 = por %p158, %p159
      %p161 = scmp.ne.s32.totalorder %s152, %s153
      %p162 = scmp.eq.s32.totalorder %s25, 0
      %p163 = por %p161, %p162
      %p164 = scmp.ne.s32.totalorder %s152, %s153
      %p165 = scmp.eq.s32.totalorder %s26, 1
      %p166 = por %p164, %p165
      %p168 = scmp.ne.s32.totalorder %s153, %s167
      %p169 = scmp.eq.s32.totalorder %s26, 0
      %p170 = por %p168, %p169
      %s172 = sadd.s32 %s171, 1
      %p175 = scmp.eq.s32.totalorder %s20, 1
      %p176 = scmp.ne.s32.totalorder %s171, %s173
      %p177 = scmp.eq.s32.totalorder %s20, 0
      %p178 = por %p176, %p177
      %p179 = scmp.ne.s32.totalorder %s171, %s173
      %p180 = scmp.eq.s32.totalorder %s25, 1
      %p181 = por %p179, %p180
      %p182 = scmp.ne.s32.totalorder %s173, %s174
      %p183 = scmp.eq.s32.totalorder %s25, 0
      %p184 = por %p182, %p183
      %p185 = scmp.ne.s32.totalorder %s173, %s174
      %p186 = scmp.eq.s32.totalorder %s26, 1
      %p187 = por %p185, %p186
      %p189 = scmp.ne.s32.totalorder %s174, %s188
      %p190 = scmp.eq.s32.totalorder %s26, 0
      %p191 = por %p189, %p190
      %s193 = sadd.s32 %s192, 1
      %p196 = scmp.eq.s32.totalorder %s20, 1
      %p197 = scmp.ne.s32.totalorder %s192, %s194
      %p198 = scmp.eq.s32.totalorder %s20, 0
      %p199 = por %p197, %p198
      %p200 = scmp.ne.s32.totalorder %s192, %s194
      %p201 = scmp.eq.s32.totalorder %s25, 1
      %p202 = por %p200, %p201
      %p203 = scmp.ne.s32.totalorder %s194, %s195
      %p204 = scmp.eq.s32.totalorder %s25, 0
      %p205 = por %p203, %p204
      %p206 = scmp.ne.s32.totalorder %s194, %s195
      %p207 = scmp.eq.s32.totalorder %s26, 1
      %p208 = por %p206, %p207
      %p210 = scmp.ne.s32.totalorder %s195, %s209
      %p211 = scmp.eq.s32.totalorder %s26, 0
      %p212 = por %p210, %p211
      %s214 = sadd.s32 %s213, 1
      %p217 = scmp.eq.s32.totalorder %s20, 1
      %p218 = scmp.ne.s32.totalorder %s213, %s215
      %p219 = scmp.eq.s32.totalorder %s20, 0
      %p220 = por %p218, %p219
      %p221 = scmp.ne.s32.totalorder %s213, %s215
      %p222 = scmp.eq.s32.totalorder %s25, 1
      %p223 = por %p221, %p222
      %p224 = scmp.ne.s32.totalorder %s215, %s216
      %p225 = scmp.eq.s32.totalorder %s25, 0
      %p226 = por %p224, %p225
      %p227 = scmp.ne.s32.totalorder %s215, %s216
      %p228 = scmp.eq.s32.totalorder %s26, 1
      %p229 = por %p227, %p228
      %p231 = scmp.ne.s32.totalorder %s216, %s230
      %p232 = scmp.eq.s32.totalorder %s26, 0
      %p233 = por %p231, %p232
      %s235 = sadd.s32 %s234, 1
      %p238 = scmp.eq.s32.totalorder %s20, 1
      %p239 = scmp.ne.s32.totalorder %s234, %s236
      %p240 = scmp.eq.s32.totalorder %s20, 0
      %p241 = por %p239, %p240
      %p242 = scmp.ne.s32.totalorder %s234, %s236
      %p243 = scmp.eq.s32.totalorder %s25, 1
      %p244 = por %p242, %p243
      %p245 = scmp.ne.s32.totalorder %s236, %s237
      %p246 = scmp.eq.s32.totalorder %s25, 0
      %p247 = por %p245, %p246
      %p248 = scmp.ne.s32.totalorder %s236, %s237
      %p249 = scmp.eq.s32.totalorder %s26, 1
      %p250 = por %p248, %p249
      %p252 = scmp.ne.s32.totalorder %s237, %s251
      %p253 = scmp.eq.s32.totalorder %s26, 0
      %p254 = por %p252, %p253
      %s255 = smul.u32 %s27, %s28
      %s256 = smul.u32 %s39, %s35
      %s257 = ssub.s32 %s255, %s256
      %p258 = scmp.eq.s32.totalorder %s257, 0
      %s260 = sadd.s32 %s259, 1
      %s261 = scalar_select %p258, %s259, %s260
      %p264 = pneg %p258
      %p265 = scmp.eq.s32.totalorder %s20, 1
      %p266 = por %p264, %p265
      %p267 = scmp.ne.s32.totalorder %s259, %s262
      %p268 = scmp.eq.s32.totalorder %s20, 0
      %p269 = por %p267, %p268
      %p270 = scmp.ne.s32.totalorder %s259, %s262
      %p271 = scmp.eq.s32.totalorder %s25, 1
      %p272 = por %p270, %p271
      %p273 = scmp.ne.s32.totalorder %s262, %s263
      %p274 = scmp.eq.s32.totalorder %s25, 0
      %p275 = por %p273, %p274
      %p276 = scmp.ne.s32.totalorder %s262, %s263
      %p277 = scmp.eq.s32.totalorder %s26, 1
      %p278 = por %p276, %p277
      %p280 = scmp.ne.s32.totalorder %s263, %s279
      %p281 = scmp.eq.s32.totalorder %s26, 0
      %p282 = por %p280, %p281
      %p283 = scmp.le.s32.totalorder 1, %s20
      %p284 = scmp.lt.s32.totalorder %s20, 3
      %p285 = pnand %p283, %p284
      %p286 = pneg %p285
      // Predicated region
      $region9: #{tpu_custom_call.1} parent=5 // pred_check
        _
      $region10: #{tpu_custom_call.1} parent=5 // pred_check_branch
        %288 = sbr.rel (%p285) target = $region12
      $region11: #{tpu_custom_call.1} parent=5 // pred_region
        %s289 = ssub.s32 %s20, 1
        // Predicated region
        $region13: #{tpu_custom_call.1} parent=11 // pred_check
          %p290 = pneg %p58
        $region14: #{tpu_custom_call.1} parent=11 // pred_check_branch
          %292 = sbr.rel (%p290) target = $region16
        $region15: #{tpu_custom_call.1} parent=11 // pred_region
          %s293 = smul.u32 2, %s30
          %p294 = scmp.lt.s32.totalorder %s293, 1
          %s295 = scalar_select %p294, %s293, 1
          %s296 = smul.addr %s295, 2
          %s297 = smul.addr %s296, 8
          %s298 = scalar_lea.vmem %s0, %s297
          %s299 = smul.u32 2, %s30
        $region16: #{tpu_custom_call.1} parent=11 // pred_fallthru
          _
        // Predicated region
        $region17: #{tpu_custom_call.1} parent=11 // pred_check
          %p300 = pneg %p79
        $region18: #{tpu_custom_call.1} parent=11 // pred_check_branch
          %302 = sbr.rel (%p300) target = $region20
        $region19: #{tpu_custom_call.1} parent=11 // pred_region
          _
        $region20: #{tpu_custom_call.1} parent=11 // pred_fallthru
          _
        // Predicated region
        $region21: #{tpu_custom_call.1} parent=11 // pred_check
          %p303 = pneg %p100
        $region22: #{tpu_custom_call.1} parent=11 // pred_check_branch
          %305 = sbr.rel (%p303) target = $region24
        $region23: #{tpu_custom_call.1} parent=11 // pred_region
          _
        $region24: #{tpu_custom_call.1} parent=11 // pred_fallthru
          _
        // Predicated region
        $region25: #{tpu_custom_call.1} parent=11 // pred_check
          %p306 = pneg %p121
        $region26: #{tpu_custom_call.1} parent=11 // pred_check_branch
          %308 = sbr.rel (%p306) target = $region28
        $region27: #{tpu_custom_call.1} parent=11 // pred_region
          _
        $region28: #{tpu_custom_call.1} parent=11 // pred_fallthru
          _
        // Predicated region
        $region29: #{tpu_custom_call.1} parent=11 // pred_check
          %p309 = pneg %p142
        $region30: #{tpu_custom_call.1} parent=11 // pred_check_branch
          %311 = sbr.rel (%p309) target = $region32
        $region31: #{tpu_custom_call.1} parent=11 // pred_region
          _
        $region32: #{tpu_custom_call.1} parent=11 // pred_fallthru
          _
        // Predicated region
        $region33: #{tpu_custom_call.1} parent=11 // pred_check
          %p312 = pneg %p163
        $region34: #{tpu_custom_call.1} parent=11 // pred_check_branch
          %314 = sbr.rel (%p312) target = $region36
        $region35: #{tpu_custom_call.1} parent=11 // pred_region
          _
        $region36: #{tpu_custom_call.1} parent=11 // pred_fallthru
          _
        // Predicated region
        $region37: #{tpu_custom_call.1} parent=11 // pred_check
          %p315 = pneg %p184
        $region38: #{tpu_custom_call.1} parent=11 // pred_check_branch
          %317 = sbr.rel (%p315) target = $region40
        $region39: #{tpu_custom_call.1} parent=11 // pred_region
          _
        $region40: #{tpu_custom_call.1} parent=11 // pred_fallthru
          _
        // Predicated region
        $region41: #{tpu_custom_call.1} parent=11 // pred_check
          %p318 = pneg %p205
        $region42: #{tpu_custom_call.1} parent=11 // pred_check_branch
          %320 = sbr.rel (%p318) target = $region44
        $region43: #{tpu_custom_call.1} parent=11 // pred_region
          _
        $region44: #{tpu_custom_call.1} parent=11 // pred_fallthru
          _
        // Predicated region
        $region45: #{tpu_custom_call.1} parent=11 // pred_check
          %p321 = pneg %p226
        $region46: #{tpu_custom_call.1} parent=11 // pred_check_branch
          %323 = sbr.rel (%p321) target = $region48
        $region47: #{tpu_custom_call.1} parent=11 // pred_region
          _
        $region48: #{tpu_custom_call.1} parent=11 // pred_fallthru
          _
        // Predicated region
        $region49: #{tpu_custom_call.1} parent=11 // pred_check
          %p324 = pneg %p247
        $region50: #{tpu_custom_call.1} parent=11 // pred_check_branch
          %326 = sbr.rel (%p324) target = $region52
        $region51: #{tpu_custom_call.1} parent=11 // pred_region
          %s328 = ssub.s32 16, 16
          %329 = vsyncadd [#allocation8], %s328
          %s331 = sshll.u32 %s9, 4
          %s332 = int_to_ptr.vmem [resolvable:$true] %s331
          %334 = dma.vmem_to_smem %s332, 16, [#allocation6], [#allocation8]
        $region52: #{tpu_custom_call.1} parent=11 // pred_fallthru
          _
      $region12: #{tpu_custom_call.1} parent=5 // pred_fallthru
        _
      %p335 = scmp.lt.s32.totalorder %s20, 2
      // Predicated region
      $region53: #{tpu_custom_call.1} parent=5 // pred_check
        %p336 = pneg %p335
      $region54: #{tpu_custom_call.1} parent=5 // pred_check_branch
        %338 = sbr.rel (%p336) target = $region56
      $region55: #{tpu_custom_call.1} parent=5 // pred_region
        _
      $region56: #{tpu_custom_call.1} parent=5 // pred_fallthru
        _
      %p339 = scmp.le.s32.totalorder 1, %s20
      %p340 = scmp.lt.s32.totalorder %s20, 3
      %p341 = pnand %p339, %p340
      %p342 = pneg %p341
      // Predicated region
      $region57: #{tpu_custom_call.1} parent=5 // pred_check
        _
      $region58: #{tpu_custom_call.1} parent=5 // pred_check_branch
        %344 = sbr.rel (%p341) target = $region60
      $region59: #{tpu_custom_call.1} parent=5 // pred_region
        %s345 = ssub.s32 %s20, 1
        // Predicated region
        $region61: #{tpu_custom_call.1} parent=59 // pred_check
          %p346 = pneg %p247
        $region62: #{tpu_custom_call.1} parent=59 // pred_check_branch
          %348 = sbr.rel (%p346) target = $region64
        $region63: #{tpu_custom_call.1} parent=59 // pred_region
          %349 = dma.done [#allocation8], 16
        $region64: #{tpu_custom_call.1} parent=59 // pred_fallthru
          _
        %350 = sfence
        %s351 = smul.u32 2, %s30
        %p352 = scmp.lt.s32.totalorder %s351, 1
        %s353 = scalar_select %p352, %s351, 1
        %s354 = smul.addr %s353, 2
        %s355 = smul.addr %s354, 8
        %s356 = scalar_lea.vmem %s0, %s355
        %p357 = pneg %p58
        %p358 = pneg %p55
        %p359 = pneg %p79
        %p360 = pneg %p76
        %p361 = pneg %p100
        %p362 = pneg %p97
        %p363 = pneg %p121
        %p364 = pneg %p118
        %p365 = pneg %p142
        %p366 = pneg %p139
        %p367 = pneg %p163
        %p368 = pneg %p160
        %p369 = pneg %p184
        %p370 = pneg %p181
        %p371 = pneg %p205
        %p372 = pneg %p202
        %p373 = pneg %p226
        %p374 = pneg %p223
        %p375 = pneg %p247
        %p376 = pneg %p244
        %p377 = pneg %p275
        %p378 = pneg %p272
        %s379 = sand.u32 %s262, 1
        %s380 = scalar_lea.sflag [#allocation7], %s379
        %s381 = sand.u32 %s262, 1
        %s382 = smul.addr %s381, 32
        %s383 = scalar_lea.vmem [#allocation9], %s382
        %s384 = smul.u32 2, %s30
        %p385 = scmp.lt.s32.totalorder %s384, 1
        %s386 = scalar_select %p385, %s384, 1
        %s387 = smul.addr %s386, 2
        %s388 = smul.addr %s387, 8
        %s389 = scalar_lea.vmem %s0, %s388
        %s390 = smul.u32 2, %s30
        %s391 = smul.u32 %s29, %s30
        %s392 = smul.u32 2, %s391
        %p393 = scmp.eq.s32.totalorder %s29, 0
        %p394 = scmp.eq.s32.totalorder %s30, 0
        %p395 = pnand %p393, %p394
        %p396 = pneg %p395
        // Predicated region
        $region65: #{tpu_custom_call.1} parent=59 // pred_check
          _
        $region66: #{tpu_custom_call.1} parent=59 // pred_check_branch
          %398 = sbr.rel (%p395) target = $region68
        $region67: #{tpu_custom_call.1} parent=59 // pred_region
          %vm399 = vcmask 7168
          %400 = vst.msk [vmem:[#allocation2] sm:$0xff] %vm399, 0.0
          %401 = vst.msk [vmem:[#allocation3] sm:$0xff] %vm399, 0.0
        $region68: #{tpu_custom_call.1} parent=59 // pred_fallthru
          _
        // Predicated region
        $region69: #{tpu_custom_call.1} parent=59 // pred_check
          %p402 = pneg %p393
        $region70: #{tpu_custom_call.1} parent=59 // pred_check_branch
          %404 = sbr.rel (%p402) target = $region72
        $region71: #{tpu_custom_call.1} parent=59 // pred_region
          %v405 = vld [vmem:[%s1] sm:$0xff]
          %v406 = vld [vmem:[%s2] sm:$0xff]
          %v407 = vld [vmem:[%s389] sm:$0xff]
          %v408 = vld [vmem:[%s389 + $0x8] sm:$0xff]
          %410 = vset.pattern.permute.xlu0 0
          %411 = vperm.xlu0 %410, %v406
          %v412 = vpop.permute.xlu0 %411
          %vm414 = vcmask 64512
          %v416 = vsel %vm414, %v405, 0
          %418 = vmatprep.subr.mxu0 %v408
          %419 = vmatpush1.msra.mxu0 %v407
          %420 = vmatprep.subr.mxu0 0.0
          %421 = vmatpush1.msra.mxu0 0.0
          %422 = vmatprep.subr.mxu0 0.0
          %423 = vmatpush1.msra.mxu0 0.0
          %424 = vmatprep.subr.mxu0 0.0
          %425 = vmatpush1.msra.mxu0 0.0
          %426 = vmatprep.subr.mxu0 0.0
          %427 = vmatpush1.msra.mxu0 0.0
          %428 = vmatprep.subr.mxu0 0.0
          %429 = vmatpush1.msra.mxu0 0.0
          %430 = vmatprep.subr.mxu0 0.0
          %431 = vmatpush1.msra.mxu0 0.0
          %432 = vmatprep.subr.mxu0 0.0
          %433 = vmatpush1.msra.mxu0 0.0
          %434 = vmatprep.subr.mxu0 0.0
          %435 = vmatpush1.msra.mxu0 0.0
          %436 = vmatprep.subr.mxu0 0.0
          %437 = vmatpush1.msra.mxu0 0.0
          %438 = vmatprep.subr.mxu0 0.0
          %439 = vmatpush1.msra.mxu0 0.0
          %440 = vmatprep.subr.mxu0 0.0
          %441 = vmatpush1.msra.mxu0 0.0
          %442 = vmatprep.subr.mxu0 0.0
          %443 = vmatpush1.msra.mxu0 0.0
          %444 = vmatprep.subr.mxu0 0.0
          %445 = vmatpush1.msra.mxu0 0.0
          %446 = vmatprep.subr.mxu0 0.0
          %447 = vmatpush1.msra.mxu0 0.0
          %448 = vmatprep.subr.mxu0 0.0
          %449 = vmatpush1.msra.mxu0 0.0
          %450 = vmatprep.subr.mxu0 0.0
          %451 = vmatpush1.msra.mxu0 0.0
          %452 = vmatprep.subr.mxu0 0.0
          %453 = vmatpush1.msra.mxu0 0.0
          %454 = vmatprep.subr.mxu0 0.0
          %455 = vmatpush1.msra.mxu0 0.0
          %456 = vmatprep.subr.mxu0 0.0
          %457 = vmatpush1.msra.mxu0 0.0
          %458 = vmatprep.subr.mxu0 0.0
          %459 = vmatpush1.msra.mxu0 0.0
          %460 = vmatprep.subr.mxu0 0.0
          %461 = vmatpush1.msra.mxu0 0.0
          %462 = vmatprep.subr.mxu0 0.0
          %463 = vmatpush1.msra.mxu0 0.0
          %464 = vmatprep.subr.mxu0 0.0
          %465 = vmatpush1.msra.mxu0 0.0
          %466 = vmatprep.subr.mxu0 0.0
          %467 = vmatpush1.msra.mxu0 0.0
          %468 = vmatprep.subr.mxu0 0.0
          %469 = vmatpush1.msra.mxu0 0.0
          %470 = vmatprep.subr.mxu0 0.0
          %471 = vmatpush1.msra.mxu0 0.0
          %472 = vmatprep.subr.mxu0 0.0
          %473 = vmatpush1.msra.mxu0 0.0
          %474 = vmatprep.subr.mxu0 0.0
          %475 = vmatpush1.msra.mxu0 0.0
          %476 = vmatprep.subr.mxu0 0.0
          %477 = vmatpush1.msra.mxu0 0.0
          %478 = vmatprep.subr.mxu0 0.0
          %479 = vmatpush1.msra.mxu0 0.0
          %480 = vmatprep.subr.mxu0 0.0
          %481 = vmatpush1.msra.mxu0 0.0
          %482 = vmatprep.mubr.f32.mxu0 0.0
          %483 = vmatmul.mubr.f32.gmra.mrb[0].mxu0 %v416
          %v484 = vpop.f32.mrb[0].mxu0
          %v485 = vadd.f32 %v412, %v484
          %v486 = vpop.f32.mrb[0].mxu0
          %v487 = vadd.f32 %v412, %v486
          %488 = vdwg.mxu0
          %v489 = vadd.f32 %v485, %v487
          %490 = vadd.xlane.f32.xlu0 %v489
          %v491 = vpop.xlane.xlu0 %490
          %v492 = vadd.f32 %v491, 0.0
          %v493 = vmul.f32 %v485, %v485
          %v494 = vmul.f32 %v487, %v487
          %v495 = vadd.f32 %v493, %v494
          %496 = vadd.xlane.f32.xlu0 %v495
          %v497 = vpop.xlane.xlu0 %496
          %v498 = vadd.f32 %v497, 0.0
          %s499 = scalar_lea.vmem %s389, 16
          %v500 = vld [vmem:[%s499] sm:$0xff]
          %v501 = vld [vmem:[%s499 + $0x8] sm:$0xff]
          %502 = vmatprep.subr.mxu0 %v501
          %503 = vmatpush1.msra.mxu0 %v500
          %504 = vmatprep.subr.mxu0 0.0
          %505 = vmatpush1.msra.mxu0 0.0
          %506 = vmatprep.subr.mxu0 0.0
          %507 = vmatpush1.msra.mxu0 0.0
          %508 = vmatprep.subr.mxu0 0.0
          %509 = vmatpush1.msra.mxu0 0.0
          %510 = vmatprep.subr.mxu0 0.0
          %511 = vmatpush1.msra.mxu0 0.0
          %512 = vmatprep.subr.mxu0 0.0
          %513 = vmatpush1.msra.mxu0 0.0
          %514 = vmatprep.subr.mxu0 0.0
          %515 = vmatpush1.msra.mxu0 0.0
          %516 = vmatprep.subr.mxu0 0.0
          %517 = vmatpush1.msra.mxu0 0.0
          %518 = vmatprep.subr.mxu0 0.0
          %519 = vmatpush1.msra.mxu0 0.0
          %520 = vmatprep.subr.mxu0 0.0
          %521 = vmatpush1.msra.mxu0 0.0
          %522 = vmatprep.subr.mxu0 0.0
          %523 = vmatpush1.msra.mxu0 0.0
          %524 = vmatprep.subr.mxu0 0.0
          %525 = vmatpush1.msra.mxu0 0.0
          %526 = vmatprep.subr.mxu0 0.0
          %527 = vmatpush1.msra.mxu0 0.0
          %528 = vmatprep.subr.mxu0 0.0
          %529 = vmatpush1.msra.mxu0 0.0
          %530 = vmatprep.subr.mxu0 0.0
          %531 = vmatpush1.msra.mxu0 0.0
          %532 = vmatprep.subr.mxu0 0.0
          %533 = vmatpush1.msra.mxu0 0.0
          %534 = vmatprep.subr.mxu0 0.0
          %535 = vmatpush1.msra.mxu0 0.0
          %536 = vmatprep.subr.mxu0 0.0
          %537 = vmatpush1.msra.mxu0 0.0
          %538 = vmatprep.subr.mxu0 0.0
          %539 = vmatpush1.msra.mxu0 0.0
          %540 = vmatprep.subr.mxu0 0.0
          %541 = vmatpush1.msra.mxu0 0.0
          %542 = vmatprep.subr.mxu0 0.0
          %543 = vmatpush1.msra.mxu0 0.0
          %544 = vmatprep.subr.mxu0 0.0
          %545 = vmatpush1.msra.mxu0 0.0
          %546 = vmatprep.subr.mxu0 0.0
          %547 = vmatpush1.msra.mxu0 0.0
          %548 = vmatprep.subr.mxu0 0.0
          %549 = vmatpush1.msra.mxu0 0.0
          %550 = vmatprep.subr.mxu0 0.0
          %551 = vmatpush1.msra.mxu0 0.0
          %552 = vmatprep.subr.mxu0 0.0
          %553 = vmatpush1.msra.mxu0 0.0
          %554 = vmatprep.subr.mxu0 0.0
          %555 = vmatpush1.msra.mxu0 0.0
          %556 = vmatprep.subr.mxu0 0.0
          %557 = vmatpush1.msra.mxu0 0.0
          %558 = vmatprep.subr.mxu0 0.0
          %559 = vmatpush1.msra.mxu0 0.0
          %560 = vmatprep.subr.mxu0 0.0
          %561 = vmatpush1.msra.mxu0 0.0
          %562 = vmatprep.subr.mxu0 0.0
          %563 = vmatpush1.msra.mxu0 0.0
          %564 = vmatprep.subr.mxu0 0.0
          %565 = vmatpush1.msra.mxu0 0.0
          %566 = vmatprep.mubr.f32.mxu0 0.0
          %567 = vmatmul.mubr.f32.gmra.mrb[0].mxu0 %v416
          %v568 = vpop.f32.mrb[0].mxu0
          %v569 = vadd.f32 %v412, %v568
          %v570 = vpop.f32.mrb[0].mxu0
          %v571 = vadd.f32 %v412, %v570
          %572 = vdwg.mxu0
          %v573 = vadd.f32 %v569, %v571
          %574 = vadd.xlane.f32.xlu0 %v573
          %v575 = vpop.xlane.xlu0 %574
          %v576 = vadd.f32 %v492, %v575
          %v577 = vmul.f32 %v569, %v569
          %v578 = vmul.f32 %v571, %v571
          %v579 = vadd.f32 %v577, %v578
          %580 = vadd.xlane.f32.xlu0 %v579
          %v581 = vpop.xlane.xlu0 %580
          %v582 = vadd.f32 %v498, %v581
          %v583 = vld [vmem:[#allocation2] sm:$0xff]
          %v584 = vadd.f32 %v583, %v576
          %vm585 = vcmask 7168
          %586 = vst.msk [vmem:[#allocation2] sm:$0xff] %vm585, %v584
          %v587 = vld [vmem:[#allocation3] sm:$0xff]
          %v588 = vadd.f32 %v587, %v582
          %589 = vst.msk [vmem:[#allocation3] sm:$0xff] %vm585, %v588
        $region72: #{tpu_custom_call.1} parent=59 // pred_fallthru
          _
        // Predicated region
        $region73: #{tpu_custom_call.1} parent=59 // pred_check
          _
        $region74: #{tpu_custom_call.1} parent=59 // pred_check_branch
          %591 = sbr.rel (%p395) target = $region76
        $region75: #{tpu_custom_call.1} parent=59 // pred_region
          %s592 = sld [smem:[#allocation6 + $0x6]]
          %v593 = vld [vmem:[#allocation2] sm:$0xff]
          %v594 = vmul.f32 %v593, 0.001953125
          %v595 = vld [vmem:[#allocation3] sm:$0xff]
          %v596 = vmul.f32 %v595, 0.001953125
          %v597 = vmul.f32 %v594, %v594
          %v598 = vsub.f32 %v596, %v597
          %v599 = vld [vmem:[%s3] sm:$0xff]
          %v600 = vstv %s592
          %v601 = vadd.f32 %v598, %v600
          %v602 = vrsqrt.pop %v601
          %v603 = vmul.f32 %v599, %v602
          %v604 = vld [vmem:[%s4] sm:$0xff]
          %v605 = vmul.f32 %v594, %v603
          %v606 = vsub.f32 %v604, %v605
          %v607 = vld [vmem:[%s1] sm:$0xff]
          %609 = vset.pattern.permute.xlu0 0
          %610 = vperm.xlu0 %609, %v603
          %v611 = vpop.permute.xlu0 %610
          %v613 = vmul.f32 %v611, %v607
          %vm614 = vcmask 64512
          %615 = vst.msk [vmem:[#allocation4] sm:$0xff] %vm614, %v613
          %v616 = vld [vmem:[%s2] sm:$0xff]
          %v617 = vmul.f32 %v603, %v616
          %v618 = vadd.f32 %v617, %v606
          %vm619 = vcmask 7168
          %620 = vst.msk [vmem:[#allocation5] sm:$0xff] %vm619, %v618
        $region76: #{tpu_custom_call.1} parent=59 // pred_fallthru
          _
        %p621 = scmp.eq.s32.totalorder %s29, 1
        // Predicated region
        $region77: #{tpu_custom_call.1} parent=59 // pred_check
          %p622 = pneg %p621
        $region78: #{tpu_custom_call.1} parent=59 // pred_check_branch
          %624 = sbr.rel (%p622) target = $region80
        $region79: #{tpu_custom_call.1} parent=59 // pred_region
          %s625 = sld [smem:[#allocation6]]
          %s626 = sld [smem:[#allocation6 + $0x1]]
          %s627 = sld [smem:[#allocation6 + $0x2]]
          %s628 = sld [smem:[#allocation6 + $0x3]]
          %s629 = sld [smem:[#allocation6 + $0x4]]
          %s630 = sld [smem:[#allocation6 + $0x5]]
          %v631 = vld [vmem:[#allocation4] sm:$0xff]
          %v632 = vld [vmem:[#allocation5] sm:$0xff]
          %v633 = vld [vmem:[%s5] sm:$0xff]
          %v634 = vld [vmem:[%s6] sm:$0x1]
          %v635 = vld [vmem:[%s7] sm:$0xff]
          %v636 = vld [vmem:[%s8] sm:$0xff]
          %v637 = vld [vmem:[%s389] sm:$0xff]
          %v638 = vld [vmem:[%s389 + $0x8] sm:$0xff]
          %640 = vset.pattern.permute.xlu0 0
          %641 = vperm.xlu0 %640, %v632
          %v642 = vpop.permute.xlu0 %641
          %vm644 = vcmask 64512
          %v646 = vsel %vm644, %v631, 0
          %648 = vmatprep.subr.mxu0 %v638
          %649 = vmatpush1.msra.mxu0 %v637
          %650 = vmatprep.subr.mxu0 0.0
          %651 = vmatpush1.msra.mxu0 0.0
          %652 = vmatprep.subr.mxu0 0.0
          %653 = vmatpush1.msra.mxu0 0.0
          %654 = vmatprep.subr.mxu0 0.0
          %655 = vmatpush1.msra.mxu0 0.0
          %656 = vmatprep.subr.mxu0 0.0
          %657 = vmatpush1.msra.mxu0 0.0
          %658 = vmatprep.subr.mxu0 0.0
          %659 = vmatpush1.msra.mxu0 0.0
          %660 = vmatprep.subr.mxu0 0.0
          %661 = vmatpush1.msra.mxu0 0.0
          %662 = vmatprep.subr.mxu0 0.0
          %663 = vmatpush1.msra.mxu0 0.0
          %664 = vmatprep.subr.mxu0 0.0
          %665 = vmatpush1.msra.mxu0 0.0
          %666 = vmatprep.subr.mxu0 0.0
          %667 = vmatpush1.msra.mxu0 0.0
          %668 = vmatprep.subr.mxu0 0.0
          %669 = vmatpush1.msra.mxu0 0.0
          %670 = vmatprep.subr.mxu0 0.0
          %671 = vmatpush1.msra.mxu0 0.0
          %672 = vmatprep.subr.mxu0 0.0
          %673 = vmatpush1.msra.mxu0 0.0
          %674 = vmatprep.subr.mxu0 0.0
          %675 = vmatpush1.msra.mxu0 0.0
          %676 = vmatprep.subr.mxu0 0.0
          %677 = vmatpush1.msra.mxu0 0.0
          %678 = vmatprep.subr.mxu0 0.0
          %679 = vmatpush1.msra.mxu0 0.0
          %680 = vmatprep.subr.mxu0 0.0
          %681 = vmatpush1.msra.mxu0 0.0
          %682 = vmatprep.subr.mxu0 0.0
          %683 = vmatpush1.msra.mxu0 0.0
          %684 = vmatprep.subr.mxu0 0.0
          %685 = vmatpush1.msra.mxu0 0.0
          %686 = vmatprep.subr.mxu0 0.0
          %687 = vmatpush1.msra.mxu0 0.0
          %688 = vmatprep.subr.mxu0 0.0
          %689 = vmatpush1.msra.mxu0 0.0
          %690 = vmatprep.subr.mxu0 0.0
          %691 = vmatpush1.msra.mxu0 0.0
          %692 = vmatprep.subr.mxu0 0.0
          %693 = vmatpush1.msra.mxu0 0.0
          %694 = vmatprep.subr.mxu0 0.0
          %695 = vmatpush1.msra.mxu0 0.0
          %696 = vmatprep.subr.mxu0 0.0
          %697 = vmatpush1.msra.mxu0 0.0
          %698 = vmatprep.subr.mxu0 0.0
          %699 = vmatpush1.msra.mxu0 0.0
          %700 = vmatprep.subr.mxu0 0.0
          %701 = vmatpush1.msra.mxu0 0.0
          %702 = vmatprep.subr.mxu0 0.0
          %703 = vmatpush1.msra.mxu0 0.0
          %704 = vmatprep.subr.mxu0 0.0
          %705 = vmatpush1.msra.mxu0 0.0
          %706 = vmatprep.subr.mxu0 0.0
          %707 = vmatpush1.msra.mxu0 0.0
          %708 = vmatprep.subr.mxu0 0.0
          %709 = vmatpush1.msra.mxu0 0.0
          %710 = vmatprep.subr.mxu0 0.0
          %711 = vmatpush1.msra.mxu0 0.0
          %712 = vmatprep.mubr.f32.mxu0 0.0
          %713 = vmatmul.mubr.f32.gmra.mrb[0].mxu0 %v646
          %v714 = vpop.f32.mrb[0].mxu0
          %v715 = vadd.f32 %v642, %v714
          %v716 = vpop.f32.mrb[0].mxu0
          %v717 = vadd.f32 %v642, %v716
          %718 = vdwg.mxu0
          %v719 = vmul.f32 %v715, 0.5
          %v720 = vmul.f32 %v717, 0.5
          %v721 = vtanh.pop %v719
          %v722 = vtanh.pop %v720
          %v723 = vadd.f32 %v721, 1.0
          %v724 = vadd.f32 %v722, 1.0
          %v725 = vmul.f32 %v723, 0.5
          %v726 = vmul.f32 %v724, 0.5
          %v727 = vstv %s626
          %v728 = vmul.f32 %v727, %v715
          %v729 = vmul.f32 %v727, %v717
          %v730 = vand.u32 2147483647, %v728
          %vm731 = vcmp.le.f32.partialorder %v730, 0.7853982
          %vm732 = vcmp.lt.s32.totalorder %v728, 0
          %v733 = vand.u32 %v728, 2139095040
          %v734 = vshrl.u32 %v733, 23
          %v735 = vsub.s32 %v734, 127
          %v736 = vand.u32 2147483647, %v728
          %v737 = vand.u32 %v736, 8388607
          %v738 = vor.u32 %v737, 8388608
          %v739 = vsub.s32 0, %v738
          %v740 = vadd.s32 %v735, 1
          %vm741 = vcmp.gt.s32.totalorder %v740, 0
          %v742 = vsel %vm741, %v740, 0
          %v743 = vshrl.u32 %v742, 5
          %v744 = vand.u32 %v742, 31
          %v745 = vsub.s32 32, %v744
          %v746 = vshrl.u32 683565275, %v745
          %v747 = vshll.u32 683565275, %v744
          %v748 = vshrl.u32 2475754826, %v745
          %v749 = vor.u32 %v747, %v748
          %v750 = vshll.u32 2475754826, %v744
          %v751 = vshrl.u32 2131351028, %v745
          %v752 = vor.u32 %v750, %v751
          %v753 = vshll.u32 2131351028, %v744
          %v754 = vshrl.u32 2102212464, %v745
          %v755 = vor.u32 %v753, %v754
          %v756 = vshll.u32 2102212464, %v744
          %v757 = vshrl.u32 920167782, %v745
          %v758 = vor.u32 %v756, %v757
          %v759 = vshll.u32 920167782, %v744
          %v760 = vshrl.u32 1326507024, %v745
          %v761 = vor.u32 %v759, %v760
          %vm762 = vcmp.lt.s32.totalorder %v743, 1
          %vm763 = vcmp.lt.s32.totalorder %v743, 2
          %vm764 = vcmp.lt.s32.totalorder %v743, 3
          %vm765 = vcmp.lt.s32.totalorder %v743, 4
          %v766 = vsel %vm762, %v746, %v749
          %v767 = vsel %vm765, %v755, 2102212464
          %v768 = vsel %vm764, %v752, %v767
          %v769 = vsel %vm763, %v766, %v768
          %v770 = vsel %vm762, %v749, %v752
          %v771 = vsel %vm765, %v758, 920167782
          %v772 = vsel %vm764, %v755, %v771
          %v773 = vsel %vm763, %v770, %v772
          %v774 = vsel %vm762, %v752, %v755
          %v775 = vsel %vm765, %v761, 1326507024
          %v776 = vsel %vm764, %v758, %v775
          %v777 = vsel %vm763, %v774, %v776
          %v778 = vshll.u32 %v738, 8
          %v779 = vmul.u32.u64.compose %v778, %v777
          %v780 = vextract.low.u32 %v779
          %v781 = vextract.high.u32 %v779
          %v782 = vmul.u32.u64.compose %v778, %v773
          %v783 = vextract.low.u32 %v782
          %v784 = vextract.high.u32 %v782
          %v785 = vmul.u32 %v778, %v769
          %v786 = vadd.s32 %v781, %v783
          %vm787 = vc.u32 %v781, %v783
          %v788 = vadd.s32 %v784, 1
          %v789 = vsel %vm787, %v788, %v784
          %v790 = vadd.s32 %v785, %v789
          %v791 = vadd.s32 %v790, 536870912
          %v792 = vshrl.u32 %v791, 30
          %v793 = vshll.u32 %v792, 30
          %v794 = vsub.s32 %v790, %v793
          %vm795 = vcmp.lt.s32.totalorder %v794, 0
          %v796 = vsub.s32 0, %v794
          %v797 = vsel %vm795, %v796, %v794
          %v798 = vclz %v797
          %v799 = vsub.s32 %v798, 2
          %vm800 = vcmp.gt.s32.totalorder 0, %v799
          %v801 = vsel %vm800, 0, %v799
          %v802 = vsub.s32 32, %v801
          %v803 = vshll.u32 %v794, %v801
          %v804 = vshrl.u32 %v786, %v802
          %v805 = vor.u32 %v803, %v804
          %v806 = vsub.s32 4294967266, %v801
          %v807 = vadd.s32 %v806, 127
          %v808 = vshll.u32 %v807, 23
          %v809 = vor.u32 4788187, %v808
          %v810 = vand.u32 2147483647, %v809
          %v812 = vcvt.s32.f32 %v805
          %v813 = vmul.f32 %v812, %v810
          %v814 = vxor.u32 %v813, 2147483648
          %v815 = vsel %vm732, %v814, %v813
          %v816 = vsub.s32 4, %v792
          %v817 = vsel %vm732, %v816, %v792
          %v818 = vsel %vm731, %v728, %v815
          %v819 = vsel %vm731, 0, %v817
          %v820 = vcosq.f32.pop %v818
          %v821 = vsinq.f32.pop %v818
          %vm822 = vweird.f32 %v728
          %v823 = vadd.s32 %v819, 3
          %v824 = vand.u32 %v823, 3
          %vm825 = vcmp.lt.s32.totalorder %v824, 2
          %vm826 = vcmp.eq.s32.totalorder %v824, 0
          %v827 = vxor.u32 %v821, 2147483648
          %v828 = vsel %vm826, %v820, %v827
          %vm829 = vcmp.eq.s32.totalorder %v824, 2
          %v830 = vxor.u32 %v820, 2147483648
          %v831 = vsel %vm829, %v830, %v821
          %v832 = vsel %vm825, %v828, %v831
          %v833 = vsel %vm822, nan, %v832
          %v834 = vand.u32 2147483647, %v729
          %vm835 = vcmp.le.f32.partialorder %v834, 0.7853982
          %vm836 = vcmp.lt.s32.totalorder %v729, 0
          %v837 = vand.u32 %v729, 2139095040
          %v838 = vshrl.u32 %v837, 23
          %v839 = vsub.s32 %v838, 127
          %v840 = vand.u32 2147483647, %v729
          %v841 = vand.u32 %v840, 8388607
          %v842 = vor.u32 %v841, 8388608
          %v843 = vsub.s32 0, %v842
          %v844 = vadd.s32 %v839, 1
          %vm845 = vcmp.gt.s32.totalorder %v844, 0
          %v846 = vsel %vm845, %v844, 0
          %v847 = vshrl.u32 %v846, 5
          %v848 = vand.u32 %v846, 31
          %v849 = vsub.s32 32, %v848
          %v850 = vshrl.u32 683565275, %v849
          %v851 = vshll.u32 683565275, %v848
          %v852 = vshrl.u32 2475754826, %v849
          %v853 = vor.u32 %v851, %v852
          %v854 = vshll.u32 2475754826, %v848
          %v855 = vshrl.u32 2131351028, %v849
          %v856 = vor.u32 %v854, %v855
          %v857 = vshll.u32 2131351028, %v848
          %v858 = vshrl.u32 2102212464, %v849
          %v859 = vor.u32 %v857, %v858
          %v860 = vshll.u32 2102212464, %v848
          %v861 = vshrl.u32 920167782, %v849
          %v862 = vor.u32 %v860, %v861
          %v863 = vshll.u32 920167782, %v848
          %v864 = vshrl.u32 1326507024, %v849
          %v865 = vor.u32 %v863, %v864
          %vm866 = vcmp.lt.s32.totalorder %v847, 1
          %vm867 = vcmp.lt.s32.totalorder %v847, 2
          %vm868 = vcmp.lt.s32.totalorder %v847, 3
          %vm869 = vcmp.lt.s32.totalorder %v847, 4
          %v870 = vsel %vm866, %v850, %v853
          %v871 = vsel %vm869, %v859, 2102212464
          %v872 = vsel %vm868, %v856, %v871
          %v873 = vsel %vm867, %v870, %v872
          %v874 = vsel %vm866, %v853, %v856
          %v875 = vsel %vm869, %v862, 920167782
          %v876 = vsel %vm868, %v859, %v875
          %v877 = vsel %vm867, %v874, %v876
          %v878 = vsel %vm866, %v856, %v859
          %v879 = vsel %vm869, %v865, 1326507024
          %v880 = vsel %vm868, %v862, %v879
          %v881 = vsel %vm867, %v878, %v880
          %v882 = vshll.u32 %v842, 8
          %v883 = vmul.u32.u64.compose %v882, %v881
          %v884 = vextract.low.u32 %v883
          %v885 = vextract.high.u32 %v883
          %v886 = vmul.u32.u64.compose %v882, %v877
          %v887 = vextract.low.u32 %v886
          %v888 = vextract.high.u32 %v886
          %v889 = vmul.u32 %v882, %v873
          %v890 = vadd.s32 %v885, %v887
          %vm891 = vc.u32 %v885, %v887
          %v892 = vadd.s32 %v888, 1
          %v893 = vsel %vm891, %v892, %v888
          %v894 = vadd.s32 %v889, %v893
          %v895 = vadd.s32 %v894, 536870912
          %v896 = vshrl.u32 %v895, 30
          %v897 = vshll.u32 %v896, 30
          %v898 = vsub.s32 %v894, %v897
          %vm899 = vcmp.lt.s32.totalorder %v898, 0
          %v900 = vsub.s32 0, %v898
          %v901 = vsel %vm899, %v900, %v898
          %v902 = vclz %v901
          %v903 = vsub.s32 %v902, 2
          %vm904 = vcmp.gt.s32.totalorder 0, %v903
          %v905 = vsel %vm904, 0, %v903
          %v906 = vsub.s32 32, %v905
          %v907 = vshll.u32 %v898, %v905
          %v908 = vshrl.u32 %v890, %v906
          %v909 = vor.u32 %v907, %v908
          %v910 = vsub.s32 4294967266, %v905
          %v911 = vadd.s32 %v910, 127
          %v912 = vshll.u32 %v911, 23
          %v913 = vor.u32 4788187, %v912
          %v914 = vand.u32 2147483647, %v913
          %v916 = vcvt.s32.f32 %v909
          %v917 = vmul.f32 %v916, %v914
          %v918 = vxor.u32 %v917, 2147483648
          %v919 = vsel %vm836, %v918, %v917
          %v920 = vsub.s32 4, %v896
          %v921 = vsel %vm836, %v920, %v896
          %v922 = vsel %vm835, %v729, %v919
          %v923 = vsel %vm835, 0, %v921
          %v924 = vcosq.f32.pop %v922
          %v925 = vsinq.f32.pop %v922
          %vm926 = vweird.f32 %v729
          %v927 = vadd.s32 %v923, 3
          %v928 = vand.u32 %v927, 3
          %vm929 = vcmp.lt.s32.totalorder %v928, 2
          %vm930 = vcmp.eq.s32.totalorder %v928, 0
          %v931 = vxor.u32 %v925, 2147483648
          %v932 = vsel %vm930, %v924, %v931
          %vm933 = vcmp.eq.s32.totalorder %v928, 2
          %v934 = vxor.u32 %v924, 2147483648
          %v935 = vsel %vm933, %v934, %v925
          %v936 = vsel %vm929, %v932, %v935
          %v937 = vsel %vm926, nan, %v936
          %v938 = vstv %s625
          %v939 = vmul.f32 %v938, %v833
          %v940 = vmul.f32 %v938, %v937
          %v941 = vadd.f32 %v715, %v939
          %v942 = vadd.f32 %v717, %v940
          %v943 = vmul.f32 %v725, %v941
          %v944 = vmul.f32 %v726, %v942
          %v945 = vadd.f32 %v943, %v944
          %946 = vadd.xlane.f32.xlu0 %v945
          %v947 = vpop.xlane.xlu0 %946
          %v948 = vmul.f32 %v947, 0.00390625
          %v949 = vmul.f32 %v633, %v948
          %vm950 = vcmask 31744
          %v951 = vsel %vm950, %v949, 0.0
          %v952 = vrot.slane %v951, 4
          %v953 = vadd.f32 %v951, %v952
          %v954 = vrot.slane %v953, 2
          %v955 = vadd.f32 %v953, %v954
          %v956 = vrot.slane %v955, 1
          %v957 = vadd.f32 %v955, %v956
          %v958 = vadd.f32 %v957, %v634
          %v959 = vmul.f32 %v958, 0.5
          %v960 = vtanh.pop %v959
          %v961 = vadd.f32 %v960, 1.0
          %v962 = vmul.f32 %v961, 0.5
          %v963 = vstv %s628
          %v964 = vmul.f32 %v963, %v958
          %v965 = vand.u32 2147483647, %v964
          %vm966 = vcmp.le.f32.partialorder %v965, 0.7853982
          %vm967 = vcmp.lt.s32.totalorder %v964, 0
          %v968 = vand.u32 %v964, 2139095040
          %v969 = vshrl.u32 %v968, 23
          %v970 = vsub.s32 %v969, 127
          %v971 = vand.u32 2147483647, %v964
          %v972 = vand.u32 %v971, 8388607
          %v973 = vor.u32 %v972, 8388608
          %v974 = vsub.s32 0, %v973
          %v975 = vadd.s32 %v970, 1
          %vm976 = vcmp.gt.s32.totalorder %v975, 0
          %v977 = vsel %vm976, %v975, 0
          %v978 = vshrl.u32 %v977, 5
          %v979 = vand.u32 %v977, 31
          %v980 = vsub.s32 32, %v979
          %v981 = vshrl.u32 683565275, %v980
          %v982 = vshll.u32 683565275, %v979
          %v983 = vshrl.u32 2475754826, %v980
          %v984 = vor.u32 %v982, %v983
          %v985 = vshll.u32 2475754826, %v979
          %v986 = vshrl.u32 2131351028, %v980
          %v987 = vor.u32 %v985, %v986
          %v988 = vshll.u32 2131351028, %v979
          %v989 = vshrl.u32 2102212464, %v980
          %v990 = vor.u32 %v988, %v989
          %v991 = vshll.u32 2102212464, %v979
          %v992 = vshrl.u32 920167782, %v980
          %v993 = vor.u32 %v991, %v992
          %v994 = vshll.u32 920167782, %v979
          %v995 = vshrl.u32 1326507024, %v980
          %v996 = vor.u32 %v994, %v995
          %vm997 = vcmp.lt.s32.totalorder %v978, 1
          %vm998 = vcmp.lt.s32.totalorder %v978, 2
          %vm999 = vcmp.lt.s32.totalorder %v978, 3
          %vm1000 = vcmp.lt.s32.totalorder %v978, 4
          %v1001 = vsel %vm997, %v981, %v984
          %v1002 = vsel %vm1000, %v990, 2102212464
          %v1003 = vsel %vm999, %v987, %v1002
          %v1004 = vsel %vm998, %v1001, %v1003
          %v1005 = vsel %vm997, %v984, %v987
          %v1006 = vsel %vm1000, %v993, 920167782
          %v1007 = vsel %vm999, %v990, %v1006
          %v1008 = vsel %vm998, %v1005, %v1007
          %v1009 = vsel %vm997, %v987, %v990
          %v1010 = vsel %vm1000, %v996, 1326507024
          %v1011 = vsel %vm999, %v993, %v1010
          %v1012 = vsel %vm998, %v1009, %v1011
          %v1013 = vshll.u32 %v973, 8
          %v1014 = vmul.u32.u64.compose %v1013, %v1012
          %v1015 = vextract.low.u32 %v1014
          %v1016 = vextract.high.u32 %v1014
          %v1017 = vmul.u32.u64.compose %v1013, %v1008
          %v1018 = vextract.low.u32 %v1017
          %v1019 = vextract.high.u32 %v1017
          %v1020 = vmul.u32 %v1013, %v1004
          %v1021 = vadd.s32 %v1016, %v1018
          %vm1022 = vc.u32 %v1016, %v1018
          %v1023 = vadd.s32 %v1019, 1
          %v1024 = vsel %vm1022, %v1023, %v1019
          %v1025 = vadd.s32 %v1020, %v1024
          %v1026 = vadd.s32 %v1025, 536870912
          %v1027 = vshrl.u32 %v1026, 30
          %v1028 = vshll.u32 %v1027, 30
          %v1029 = vsub.s32 %v1025, %v1028
          %vm1030 = vcmp.lt.s32.totalorder %v1029, 0
          %v1031 = vsub.s32 0, %v1029
          %v1032 = vsel %vm1030, %v1031, %v1029
          %v1033 = vclz %v1032
          %v1034 = vsub.s32 %v1033, 2
          %vm1035 = vcmp.gt.s32.totalorder 0, %v1034
          %v1036 = vsel %vm1035, 0, %v1034
          %v1037 = vsub.s32 32, %v1036
          %v1038 = vshll.u32 %v1029, %v1036
          %v1039 = vshrl.u32 %v1021, %v1037
          %v1040 = vor.u32 %v1038, %v1039
          %v1041 = vsub.s32 4294967266, %v1036
          %v1042 = vadd.s32 %v1041, 127
          %v1043 = vshll.u32 %v1042, 23
          %v1044 = vor.u32 4788187, %v1043
          %v1045 = vand.u32 2147483647, %v1044
          %v1047 = vcvt.s32.f32 %v1040
          %v1048 = vmul.f32 %v1047, %v1045
          %v1049 = vxor.u32 %v1048, 2147483648
          %v1050 = vsel %vm967, %v1049, %v1048
          %v1051 = vsub.s32 4, %v1027
          %v1052 = vsel %vm967, %v1051, %v1027
          %v1053 = vsel %vm966, %v964, %v1050
          %v1054 = vsel %vm966, 0, %v1052
          %v1055 = vcosq.f32.pop %v1053
          %v1056 = vsinq.f32.pop %v1053
          %vm1057 = vweird.f32 %v964
          %v1058 = vadd.s32 %v1054, 3
          %v1059 = vand.u32 %v1058, 3
          %vm1060 = vcmp.lt.s32.totalorder %v1059, 2
          %vm1061 = vcmp.eq.s32.totalorder %v1059, 0
          %v1062 = vxor.u32 %v1056, 2147483648
          %v1063 = vsel %vm1061, %v1055, %v1062
          %vm1064 = vcmp.eq.s32.totalorder %v1059, 2
          %v1065 = vxor.u32 %v1055, 2147483648
          %v1066 = vsel %vm1064, %v1065, %v1056
          %v1067 = vsel %vm1060, %v1063, %v1066
          %v1068 = vsel %vm1057, nan, %v1067
          %v1069 = vstv %s627
          %v1070 = vmul.f32 %v1069, %v1068
          %v1071 = vadd.f32 %v958, %v1070
          %v1072 = vmul.f32 %v962, %v1071
          %v1073 = vlaneseq
          %v1074 = vshrl.u32 %v1073, 7
          %v1075 = vsub.s32 0, %v1074
          %v1076 = vrot.slane %v1072, %v1075
          %v1077 = vmul.f32 %v635, %v1076
          %v1078 = vsel %vm950, %v1077, 0.0
          %1079 = vadd.xlane.f32.xlu0 %v1078
          %v1080 = vpop.xlane.xlu0 %1079
          %v1081 = vadd.f32 %v1080, %v636
          %v1082 = vmul.f32 %v1081, 0.5
          %v1083 = vtanh.pop %v1082
          %v1084 = vadd.f32 %v1083, 1.0
          %v1085 = vmul.f32 %v1084, 0.5
          %1087 = vset.pattern.permute.xlu0 0
          %1088 = vperm.xlu0 %1087, %v1085
          %v1089 = vpop.permute.xlu0 %1088
          %v1091 = vmul.f32 %v943, %v1089
          %v1092 = vmul.f32 %v944, %v1089
          %v1093 = vadd.f32 %v1091, %v637
          %v1094 = vadd.f32 %v1092, %v638
          %v1095 = vmul.f32 %v1093, 0.5
          %v1096 = vmul.f32 %v1094, 0.5
          %v1097 = vtanh.pop %v1095
          %v1098 = vtanh.pop %v1096
          %v1099 = vadd.f32 %v1097, 1.0
          %v1100 = vadd.f32 %v1098, 1.0
          %v1101 = vmul.f32 %v1099, 0.5
          %v1102 = vmul.f32 %v1100, 0.5
          %v1103 = vstv %s630
          %v1104 = vmul.f32 %v1103, %v1093
          %v1105 = vmul.f32 %v1103, %v1094
          %v1106 = vand.u32 2147483647, %v1104
          %vm1107 = vcmp.le.f32.partialorder %v1106, 0.7853982
          %vm1108 = vcmp.lt.s32.totalorder %v1104, 0
          %v1109 = vand.u32 %v1104, 2139095040
          %v1110 = vshrl.u32 %v1109, 23
          %v1111 = vsub.s32 %v1110, 127
          %v1112 = vand.u32 2147483647, %v1104
          %v1113 = vand.u32 %v1112, 8388607
          %v1114 = vor.u32 %v1113, 8388608
          %v1115 = vsub.s32 0, %v1114
          %v1116 = vadd.s32 %v1111, 1
          %vm1117 = vcmp.gt.s32.totalorder %v1116, 0
          %v1118 = vsel %vm1117, %v1116, 0
          %v1119 = vshrl.u32 %v1118, 5
          %v1120 = vand.u32 %v1118, 31
          %v1121 = vsub.s32 32, %v1120
          %v1122 = vshrl.u32 683565275, %v1121
          %v1123 = vshll.u32 683565275, %v1120
          %v1124 = vshrl.u32 2475754826, %v1121
          %v1125 = vor.u32 %v1123, %v1124
          %v1126 = vshll.u32 2475754826, %v1120
          %v1127 = vshrl.u32 2131351028, %v1121
          %v1128 = vor.u32 %v1126, %v1127
          %v1129 = vshll.u32 2131351028, %v1120
          %v1130 = vshrl.u32 2102212464, %v1121
          %v1131 = vor.u32 %v1129, %v1130
          %v1132 = vshll.u32 2102212464, %v1120
          %v1133 = vshrl.u32 920167782, %v1121
          %v1134 = vor.u32 %v1132, %v1133
          %v1135 = vshll.u32 920167782, %v1120
          %v1136 = vshrl.u32 1326507024, %v1121
          %v1137 = vor.u32 %v1135, %v1136
          %vm1138 = vcmp.lt.s32.totalorder %v1119, 1
          %vm1139 = vcmp.lt.s32.totalorder %v1119, 2
          %vm1140 = vcmp.lt.s32.totalorder %v1119, 3
          %vm1141 = vcmp.lt.s32.totalorder %v1119, 4
          %v1142 = vsel %vm1138, %v1122, %v1125
          %v1143 = vsel %vm1141, %v1131, 2102212464
          %v1144 = vsel %vm1140, %v1128, %v1143
          %v1145 = vsel %vm1139, %v1142, %v1144
          %v1146 = vsel %vm1138, %v1125, %v1128
          %v1147 = vsel %vm1141, %v1134, 920167782
          %v1148 = vsel %vm1140, %v1131, %v1147
          %v1149 = vsel %vm1139, %v1146, %v1148
          %v1150 = vsel %vm1138, %v1128, %v1131
          %v1151 = vsel %vm1141, %v1137, 1326507024
          %v1152 = vsel %vm1140, %v1134, %v1151
          %v1153 = vsel %vm1139, %v1150, %v1152
          %v1154 = vshll.u32 %v1114, 8
          %v1155 = vmul.u32.u64.compose %v1154, %v1153
          %v1156 = vextract.low.u32 %v1155
          %v1157 = vextract.high.u32 %v1155
          %v1158 = vmul.u32.u64.compose %v1154, %v1149
          %v1159 = vextract.low.u32 %v1158
          %v1160 = vextract.high.u32 %v1158
          %v1161 = vmul.u32 %v1154, %v1145
          %v1162 = vadd.s32 %v1157, %v1159
          %vm1163 = vc.u32 %v1157, %v1159
          %v1164 = vadd.s32 %v1160, 1
          %v1165 = vsel %vm1163, %v1164, %v1160
          %v1166 = vadd.s32 %v1161, %v1165
          %v1167 = vadd.s32 %v1166, 536870912
          %v1168 = vshrl.u32 %v1167, 30
          %v1169 = vshll.u32 %v1168, 30
          %v1170 = vsub.s32 %v1166, %v1169
          %vm1171 = vcmp.lt.s32.totalorder %v1170, 0
          %v1172 = vsub.s32 0, %v1170
          %v1173 = vsel %vm1171, %v1172, %v1170
          %v1174 = vclz %v1173
          %v1175 = vsub.s32 %v1174, 2
          %vm1176 = vcmp.gt.s32.totalorder 0, %v1175
          %v1177 = vsel %vm1176, 0, %v1175
          %v1178 = vsub.s32 32, %v1177
          %v1179 = vshll.u32 %v1170, %v1177
          %v1180 = vshrl.u32 %v1162, %v1178
          %v1181 = vor.u32 %v1179, %v1180
          %v1182 = vsub.s32 4294967266, %v1177
          %v1183 = vadd.s32 %v1182, 127
          %v1184 = vshll.u32 %v1183, 23
          %v1185 = vor.u32 4788187, %v1184
          %v1186 = vand.u32 2147483647, %v1185
          %v1188 = vcvt.s32.f32 %v1181
          %v1189 = vmul.f32 %v1188, %v1186
          %v1190 = vxor.u32 %v1189, 2147483648
          %v1191 = vsel %vm1108, %v1190, %v1189
          %v1192 = vsub.s32 4, %v1168
          %v1193 = vsel %vm1108, %v1192, %v1168
          %v1194 = vsel %vm1107, %v1104, %v1191
          %v1195 = vsel %vm1107, 0, %v1193
          %v1196 = vcosq.f32.pop %v1194
          %v1197 = vsinq.f32.pop %v1194
          %vm1198 = vweird.f32 %v1104
          %v1199 = vadd.s32 %v1195, 3
          %v1200 = vand.u32 %v1199, 3
          %vm1201 = vcmp.lt.s32.totalorder %v1200, 2
          %vm1202 = vcmp.eq.s32.totalorder %v1200, 0
          %v1203 = vxor.u32 %v1197, 2147483648
          %v1204 = vsel %vm1202, %v1196, %v1203
          %vm1205 = vcmp.eq.s32.totalorder %v1200, 2
          %v1206 = vxor.u32 %v1196, 2147483648
          %v1207 = vsel %vm1205, %v1206, %v1197
          %v1208 = vsel %vm1201, %v1204, %v1207
          %v1209 = vsel %vm1198, nan, %v1208
          %v1210 = vand.u32 2147483647, %v1105
          %vm1211 = vcmp.le.f32.partialorder %v1210, 0.7853982
          %vm1212 = vcmp.lt.s32.totalorder %v1105, 0
          %v1213 = vand.u32 %v1105, 2139095040
          %v1214 = vshrl.u32 %v1213, 23
          %v1215 = vsub.s32 %v1214, 127
          %v1216 = vand.u32 2147483647, %v1105
          %v1217 = vand.u32 %v1216, 8388607
          %v1218 = vor.u32 %v1217, 8388608
          %v1219 = vsub.s32 0, %v1218
          %v1220 = vadd.s32 %v1215, 1
          %vm1221 = vcmp.gt.s32.totalorder %v1220, 0
          %v1222 = vsel %vm1221, %v1220, 0
          %v1223 = vshrl.u32 %v1222, 5
          %v1224 = vand.u32 %v1222, 31
          %v1225 = vsub.s32 32, %v1224
          %v1226 = vshrl.u32 683565275, %v1225
          %v1227 = vshll.u32 683565275, %v1224
          %v1228 = vshrl.u32 2475754826, %v1225
          %v1229 = vor.u32 %v1227, %v1228
          %v1230 = vshll.u32 2475754826, %v1224
          %v1231 = vshrl.u32 2131351028, %v1225
          %v1232 = vor.u32 %v1230, %v1231
          %v1233 = vshll.u32 2131351028, %v1224
          %v1234 = vshrl.u32 2102212464, %v1225
          %v1235 = vor.u32 %v1233, %v1234
          %v1236 = vshll.u32 2102212464, %v1224
          %v1237 = vshrl.u32 920167782, %v1225
          %v1238 = vor.u32 %v1236, %v1237
          %v1239 = vshll.u32 920167782, %v1224
          %v1240 = vshrl.u32 1326507024, %v1225
          %v1241 = vor.u32 %v1239, %v1240
          %vm1242 = vcmp.lt.s32.totalorder %v1223, 1
          %vm1243 = vcmp.lt.s32.totalorder %v1223, 2
          %vm1244 = vcmp.lt.s32.totalorder %v1223, 3
          %vm1245 = vcmp.lt.s32.totalorder %v1223, 4
          %v1246 = vsel %vm1242, %v1226, %v1229
          %v1247 = vsel %vm1245, %v1235, 2102212464
          %v1248 = vsel %vm1244, %v1232, %v1247
          %v1249 = vsel %vm1243, %v1246, %v1248
          %v1250 = vsel %vm1242, %v1229, %v1232
          %v1251 = vsel %vm1245, %v1238, 920167782
          %v1252 = vsel %vm1244, %v1235, %v1251
          %v1253 = vsel %vm1243, %v1250, %v1252
          %v1254 = vsel %vm1242, %v1232, %v1235
          %v1255 = vsel %vm1245, %v1241, 1326507024
          %v1256 = vsel %vm1244, %v1238, %v1255
          %v1257 = vsel %vm1243, %v1254, %v1256
          %v1258 = vshll.u32 %v1218, 8
          %v1259 = vmul.u32.u64.compose %v1258, %v1257
          %v1260 = vextract.low.u32 %v1259
          %v1261 = vextract.high.u32 %v1259
          %v1262 = vmul.u32.u64.compose %v1258, %v1253
          %v1263 = vextract.low.u32 %v1262
          %v1264 = vextract.high.u32 %v1262
          %v1265 = vmul.u32 %v1258, %v1249
          %v1266 = vadd.s32 %v1261, %v1263
          %vm1267 = vc.u32 %v1261, %v1263
          %v1268 = vadd.s32 %v1264, 1
          %v1269 = vsel %vm1267, %v1268, %v1264
          %v1270 = vadd.s32 %v1265, %v1269
          %v1271 = vadd.s32 %v1270, 536870912
          %v1272 = vshrl.u32 %v1271, 30
          %v1273 = vshll.u32 %v1272, 30
          %v1274 = vsub.s32 %v1270, %v1273
          %vm1275 = vcmp.lt.s32.totalorder %v1274, 0
          %v1276 = vsub.s32 0, %v1274
          %v1277 = vsel %vm1275, %v1276, %v1274
          %v1278 = vclz %v1277
          %v1279 = vsub.s32 %v1278, 2
          %vm1280 = vcmp.gt.s32.totalorder 0, %v1279
          %v1281 = vsel %vm1280, 0, %v1279
          %v1282 = vsub.s32 32, %v1281
          %v1283 = vshll.u32 %v1274, %v1281
          %v1284 = vshrl.u32 %v1266, %v1282
          %v1285 = vor.u32 %v1283, %v1284
          %v1286 = vsub.s32 4294967266, %v1281
          %v1287 = vadd.s32 %v1286, 127
          %v1288 = vshll.u32 %v1287, 23
          %v1289 = vor.u32 4788187, %v1288
          %v1290 = vand.u32 2147483647, %v1289
          %v1292 = vcvt.s32.f32 %v1285
          %v1293 = vmul.f32 %v1292, %v1290
          %v1294 = vxor.u32 %v1293, 2147483648
          %v1295 = vsel %vm1212, %v1294, %v1293
          %v1296 = vsub.s32 4, %v1272
          %v1297 = vsel %vm1212, %v1296, %v1272
          %v1298 = vsel %vm1211, %v1105, %v1295
          %v1299 = vsel %vm1211, 0, %v1297
          %v1300 = vcosq.f32.pop %v1298
          %v1301 = vsinq.f32.pop %v1298
          %vm1302 = vweird.f32 %v1105
          %v1303 = vadd.s32 %v1299, 3
          %v1304 = vand.u32 %v1303, 3
          %vm1305 = vcmp.lt.s32.totalorder %v1304, 2
          %vm1306 = vcmp.eq.s32.totalorder %v1304, 0
          %v1307 = vxor.u32 %v1301, 2147483648
          %v1308 = vsel %vm1306, %v1300, %v1307
          %vm1309 = vcmp.eq.s32.totalorder %v1304, 2
          %v1310 = vxor.u32 %v1300, 2147483648
          %v1311 = vsel %vm1309, %v1310, %v1301
          %v1312 = vsel %vm1305, %v1308, %v1311
          %v1313 = vsel %vm1302, nan, %v1312
          %v1314 = vstv %s629
          %v1315 = vmul.f32 %v1314, %v1209
          %v1316 = vmul.f32 %v1314, %v1313
          %v1317 = vadd.f32 %v1093, %v1315
          %v1318 = vadd.f32 %v1094, %v1316
          %v1319 = vmul.f32 %v1101, %v1317
          %v1320 = vmul.f32 %v1102, %v1318
          %1321 = vst [vmem:[%s383] sm:$0xff] %v1319
          %1322 = vst [vmem:[%s383 + $0x8] sm:$0xff] %v1320
          %s1323 = scalar_lea.vmem %s389, 16
          %v1324 = vld [vmem:[%s1323] sm:$0xff]
          %v1325 = vld [vmem:[%s1323 + $0x8] sm:$0xff]
          %1326 = vmatprep.subr.mxu0 %v1325
          %1327 = vmatpush1.msra.mxu0 %v1324
          %1328 = vmatprep.subr.mxu0 0.0
          %1329 = vmatpush1.msra.mxu0 0.0
          %1330 = vmatprep.subr.mxu0 0.0
          %1331 = vmatpush1.msra.mxu0 0.0
          %1332 = vmatprep.subr.mxu0 0.0
          %1333 = vmatpush1.msra.mxu0 0.0
          %1334 = vmatprep.subr.mxu0 0.0
          %1335 = vmatpush1.msra.mxu0 0.0
          %1336 = vmatprep.subr.mxu0 0.0
          %1337 = vmatpush1.msra.mxu0 0.0
          %1338 = vmatprep.subr.mxu0 0.0
          %1339 = vmatpush1.msra.mxu0 0.0
          %1340 = vmatprep.subr.mxu0 0.0
          %1341 = vmatpush1.msra.mxu0 0.0
          %1342 = vmatprep.subr.mxu0 0.0
          %1343 = vmatpush1.msra.mxu0 0.0
          %1344 = vmatprep.subr.mxu0 0.0
          %1345 = vmatpush1.msra.mxu0 0.0
          %1346 = vmatprep.subr.mxu0 0.0
          %1347 = vmatpush1.msra.mxu0 0.0
          %1348 = vmatprep.subr.mxu0 0.0
          %1349 = vmatpush1.msra.mxu0 0.0
          %1350 = vmatprep.subr.mxu0 0.0
          %1351 = vmatpush1.msra.mxu0 0.0
          %1352 = vmatprep.subr.mxu0 0.0
          %1353 = vmatpush1.msra.mxu0 0.0
          %1354 = vmatprep.subr.mxu0 0.0
          %1355 = vmatpush1.msra.mxu0 0.0
          %1356 = vmatprep.subr.mxu0 0.0
          %1357 = vmatpush1.msra.mxu0 0.0
          %1358 = vmatprep.subr.mxu0 0.0
          %1359 = vmatpush1.msra.mxu0 0.0
          %1360 = vmatprep.subr.mxu0 0.0
          %1361 = vmatpush1.msra.mxu0 0.0
          %1362 = vmatprep.subr.mxu0 0.0
          %1363 = vmatpush1.msra.mxu0 0.0
          %1364 = vmatprep.subr.mxu0 0.0
          %1365 = vmatpush1.msra.mxu0 0.0
          %1366 = vmatprep.subr.mxu0 0.0
          %1367 = vmatpush1.msra.mxu0 0.0
          %1368 = vmatprep.subr.mxu0 0.0
          %1369 = vmatpush1.msra.mxu0 0.0
          %1370 = vmatprep.subr.mxu0 0.0
          %1371 = vmatpush1.msra.mxu0 0.0
          %1372 = vmatprep.subr.mxu0 0.0
          %1373 = vmatpush1.msra.mxu0 0.0
          %1374 = vmatprep.subr.mxu0 0.0
          %1375 = vmatpush1.msra.mxu0 0.0
          %1376 = vmatprep.subr.mxu0 0.0
          %1377 = vmatpush1.msra.mxu0 0.0
          %1378 = vmatprep.subr.mxu0 0.0
          %1379 = vmatpush1.msra.mxu0 0.0
          %1380 = vmatprep.subr.mxu0 0.0
          %1381 = vmatpush1.msra.mxu0 0.0
          %1382 = vmatprep.subr.mxu0 0.0
          %1383 = vmatpush1.msra.mxu0 0.0
          %1384 = vmatprep.subr.mxu0 0.0
          %1385 = vmatpush1.msra.mxu0 0.0
          %1386 = vmatprep.subr.mxu0 0.0
          %1387 = vmatpush1.msra.mxu0 0.0
          %1388 = vmatprep.subr.mxu0 0.0
          %1389 = vmatpush1.msra.mxu0 0.0
          %1390 = vmatprep.mubr.f32.mxu0 0.0
          %1391 = vmatmul.mubr.f32.gmra.mrb[0].mxu0 %v646
          %v1392 = vpop.f32.mrb[0].mxu0
          %v1393 = vadd.f32 %v642, %v1392
          %v1394 = vpop.f32.mrb[0].mxu0
          %v1395 = vadd.f32 %v642, %v1394
          %1396 = vdwg.mxu0
          %v1397 = vmul.f32 %v1393, 0.5
          %v1398 = vmul.f32 %v1395, 0.5
          %v1399 = vtanh.pop %v1397
          %v1400 = vtanh.pop %v1398
          %v1401 = vadd.f32 %v1399, 1.0
          %v1402 = vadd.f32 %v1400, 1.0
          %v1403 = vmul.f32 %v1401, 0.5
          %v1404 = vmul.f32 %v1402, 0.5
          %v1405 = vmul.f32 %v727, %v1393
          %v1406 = vmul.f32 %v727, %v1395
          %v1407 = vand.u32 2147483647, %v1405
          %vm1408 = vcmp.le.f32.partialorder %v1407, 0.7853982
          %vm1409 = vcmp.lt.s32.totalorder %v1405, 0
          %v1410 = vand.u32 %v1405, 2139095040
          %v1411 = vshrl.u32 %v1410, 23
          %v1412 = vsub.s32 %v1411, 127
          %v1413 = vand.u32 2147483647, %v1405
          %v1414 = vand.u32 %v1413, 8388607
          %v1415 = vor.u32 %v1414, 8388608
          %v1416 = vsub.s32 0, %v1415
          %v1417 = vadd.s32 %v1412, 1
          %vm1418 = vcmp.gt.s32.totalorder %v1417, 0
          %v1419 = vsel %vm1418, %v1417, 0
          %v1420 = vshrl.u32 %v1419, 5
          %v1421 = vand.u32 %v1419, 31
          %v1422 = vsub.s32 32, %v1421
          %v1423 = vshrl.u32 683565275, %v1422
          %v1424 = vshll.u32 683565275, %v1421
          %v1425 = vshrl.u32 2475754826, %v1422
          %v1426 = vor.u32 %v1424, %v1425
          %v1427 = vshll.u32 2475754826, %v1421
          %v1428 = vshrl.u32 2131351028, %v1422
          %v1429 = vor.u32 %v1427, %v1428
          %v1430 = vshll.u32 2131351028, %v1421
          %v1431 = vshrl.u32 2102212464, %v1422
          %v1432 = vor.u32 %v1430, %v1431
          %v1433 = vshll.u32 2102212464, %v1421
          %v1434 = vshrl.u32 920167782, %v1422
          %v1435 = vor.u32 %v1433, %v1434
          %v1436 = vshll.u32 920167782, %v1421
          %v1437 = vshrl.u32 1326507024, %v1422
          %v1438 = vor.u32 %v1436, %v1437
          %vm1439 = vcmp.lt.s32.totalorder %v1420, 1
          %vm1440 = vcmp.lt.s32.totalorder %v1420, 2
          %vm1441 = vcmp.lt.s32.totalorder %v1420, 3
          %vm1442 = vcmp.lt.s32.totalorder %v1420, 4
          %v1443 = vsel %vm1439, %v1423, %v1426
          %v1444 = vsel %vm1442, %v1432, 2102212464
          %v1445 = vsel %vm1441, %v1429, %v1444
          %v1446 = vsel %vm1440, %v1443, %v1445
          %v1447 = vsel %vm1439, %v1426, %v1429
          %v1448 = vsel %vm1442, %v1435, 920167782
          %v1449 = vsel %vm1441, %v1432, %v1448
          %v1450 = vsel %vm1440, %v1447, %v1449
          %v1451 = vsel %vm1439, %v1429, %v1432
          %v1452 = vsel %vm1442, %v1438, 1326507024
          %v1453 = vsel %vm1441, %v1435, %v1452
          %v1454 = vsel %vm1440, %v1451, %v1453
          %v1455 = vshll.u32 %v1415, 8
          %v1456 = vmul.u32.u64.compose %v1455, %v1454
          %v1457 = vextract.low.u32 %v1456
          %v1458 = vextract.high.u32 %v1456
          %v1459 = vmul.u32.u64.compose %v1455, %v1450
          %v1460 = vextract.low.u32 %v1459
          %v1461 = vextract.high.u32 %v1459
          %v1462 = vmul.u32 %v1455, %v1446
          %v1463 = vadd.s32 %v1458, %v1460
          %vm1464 = vc.u32 %v1458, %v1460
          %v1465 = vadd.s32 %v1461, 1
          %v1466 = vsel %vm1464, %v1465, %v1461
          %v1467 = vadd.s32 %v1462, %v1466
          %v1468 = vadd.s32 %v1467, 536870912
          %v1469 = vshrl.u32 %v1468, 30
          %v1470 = vshll.u32 %v1469, 30
          %v1471 = vsub.s32 %v1467, %v1470
          %vm1472 = vcmp.lt.s32.totalorder %v1471, 0
          %v1473 = vsub.s32 0, %v1471
          %v1474 = vsel %vm1472, %v1473, %v1471
          %v1475 = vclz %v1474
          %v1476 = vsub.s32 %v1475, 2
          %vm1477 = vcmp.gt.s32.totalorder 0, %v1476
          %v1478 = vsel %vm1477, 0, %v1476
          %v1479 = vsub.s32 32, %v1478
          %v1480 = vshll.u32 %v1471, %v1478
          %v1481 = vshrl.u32 %v1463, %v1479
          %v1482 = vor.u32 %v1480, %v1481
          %v1483 = vsub.s32 4294967266, %v1478
          %v1484 = vadd.s32 %v1483, 127
          %v1485 = vshll.u32 %v1484, 23
          %v1486 = vor.u32 4788187, %v1485
          %v1487 = vand.u32 2147483647, %v1486
          %v1489 = vcvt.s32.f32 %v1482
          %v1490 = vmul.f32 %v1489, %v1487
          %v1491 = vxor.u32 %v1490, 2147483648
          %v1492 = vsel %vm1409, %v1491, %v1490
          %v1493 = vsub.s32 4, %v1469
          %v1494 = vsel %vm1409, %v1493, %v1469
          %v1495 = vsel %vm1408, %v1405, %v1492
          %v1496 = vsel %vm1408, 0, %v1494
          %v1497 = vcosq.f32.pop %v1495
          %v1498 = vsinq.f32.pop %v1495
          %vm1499 = vweird.f32 %v1405
          %v1500 = vadd.s32 %v1496, 3
          %v1501 = vand.u32 %v1500, 3
          %vm1502 = vcmp.lt.s32.totalorder %v1501, 2
          %vm1503 = vcmp.eq.s32.totalorder %v1501, 0
          %v1504 = vxor.u32 %v1498, 2147483648
          %v1505 = vsel %vm1503, %v1497, %v1504
          %vm1506 = vcmp.eq.s32.totalorder %v1501, 2
          %v1507 = vxor.u32 %v1497, 2147483648
          %v1508 = vsel %vm1506, %v1507, %v1498
          %v1509 = vsel %vm1502, %v1505, %v1508
          %v1510 = vsel %vm1499, nan, %v1509
          %v1511 = vand.u32 2147483647, %v1406
          %vm1512 = vcmp.le.f32.partialorder %v1511, 0.7853982
          %vm1513 = vcmp.lt.s32.totalorder %v1406, 0
          %v1514 = vand.u32 %v1406, 2139095040
          %v1515 = vshrl.u32 %v1514, 23
          %v1516 = vsub.s32 %v1515, 127
          %v1517 = vand.u32 2147483647, %v1406
          %v1518 = vand.u32 %v1517, 8388607
          %v1519 = vor.u32 %v1518, 8388608
          %v1520 = vsub.s32 0, %v1519
          %v1521 = vadd.s32 %v1516, 1
          %vm1522 = vcmp.gt.s32.totalorder %v1521, 0
          %v1523 = vsel %vm1522, %v1521, 0
          %v1524 = vshrl.u32 %v1523, 5
          %v1525 = vand.u32 %v1523, 31
          %v1526 = vsub.s32 32, %v1525
          %v1527 = vshrl.u32 683565275, %v1526
          %v1528 = vshll.u32 683565275, %v1525
          %v1529 = vshrl.u32 2475754826, %v1526
          %v1530 = vor.u32 %v1528, %v1529
          %v1531 = vshll.u32 2475754826, %v1525
          %v1532 = vshrl.u32 2131351028, %v1526
          %v1533 = vor.u32 %v1531, %v1532
          %v1534 = vshll.u32 2131351028, %v1525
          %v1535 = vshrl.u32 2102212464, %v1526
          %v1536 = vor.u32 %v1534, %v1535
          %v1537 = vshll.u32 2102212464, %v1525
          %v1538 = vshrl.u32 920167782, %v1526
          %v1539 = vor.u32 %v1537, %v1538
          %v1540 = vshll.u32 920167782, %v1525
          %v1541 = vshrl.u32 1326507024, %v1526
          %v1542 = vor.u32 %v1540, %v1541
          %vm1543 = vcmp.lt.s32.totalorder %v1524, 1
          %vm1544 = vcmp.lt.s32.totalorder %v1524, 2
          %vm1545 = vcmp.lt.s32.totalorder %v1524, 3
          %vm1546 = vcmp.lt.s32.totalorder %v1524, 4
          %v1547 = vsel %vm1543, %v1527, %v1530
          %v1548 = vsel %vm1546, %v1536, 2102212464
          %v1549 = vsel %vm1545, %v1533, %v1548
          %v1550 = vsel %vm1544, %v1547, %v1549
          %v1551 = vsel %vm1543, %v1530, %v1533
          %v1552 = vsel %vm1546, %v1539, 920167782
          %v1553 = vsel %vm1545, %v1536, %v1552
          %v1554 = vsel %vm1544, %v1551, %v1553
          %v1555 = vsel %vm1543, %v1533, %v1536
          %v1556 = vsel %vm1546, %v1542, 1326507024
          %v1557 = vsel %vm1545, %v1539, %v1556
          %v1558 = vsel %vm1544, %v1555, %v1557
          %v1559 = vshll.u32 %v1519, 8
          %v1560 = vmul.u32.u64.compose %v1559, %v1558
          %v1561 = vextract.low.u32 %v1560
          %v1562 = vextract.high.u32 %v1560
          %v1563 = vmul.u32.u64.compose %v1559, %v1554
          %v1564 = vextract.low.u32 %v1563
          %v1565 = vextract.high.u32 %v1563
          %v1566 = vmul.u32 %v1559, %v1550
          %v1567 = vadd.s32 %v1562, %v1564
          %vm1568 = vc.u32 %v1562, %v1564
          %v1569 = vadd.s32 %v1565, 1
          %v1570 = vsel %vm1568, %v1569, %v1565
          %v1571 = vadd.s32 %v1566, %v1570
          %v1572 = vadd.s32 %v1571, 536870912
          %v1573 = vshrl.u32 %v1572, 30
          %v1574 = vshll.u32 %v1573, 30
          %v1575 = vsub.s32 %v1571, %v1574
          %vm1576 = vcmp.lt.s32.totalorder %v1575, 0
          %v1577 = vsub.s32 0, %v1575
          %v1578 = vsel %vm1576, %v1577, %v1575
          %v1579 = vclz %v1578
          %v1580 = vsub.s32 %v1579, 2
          %vm1581 = vcmp.gt.s32.totalorder 0, %v1580
          %v1582 = vsel %vm1581, 0, %v1580
          %v1583 = vsub.s32 32, %v1582
          %v1584 = vshll.u32 %v1575, %v1582
          %v1585 = vshrl.u32 %v1567, %v1583
          %v1586 = vor.u32 %v1584, %v1585
          %v1587 = vsub.s32 4294967266, %v1582
          %v1588 = vadd.s32 %v1587, 127
          %v1589 = vshll.u32 %v1588, 23
          %v1590 = vor.u32 4788187, %v1589
          %v1591 = vand.u32 2147483647, %v1590
          %v1593 = vcvt.s32.f32 %v1586
          %v1594 = vmul.f32 %v1593, %v1591
          %v1595 = vxor.u32 %v1594, 2147483648
          %v1596 = vsel %vm1513, %v1595, %v1594
          %v1597 = vsub.s32 4, %v1573
          %v1598 = vsel %vm1513, %v1597, %v1573
          %v1599 = vsel %vm1512, %v1406, %v1596
          %v1600 = vsel %vm1512, 0, %v1598
          %v1601 = vcosq.f32.pop %v1599
          %v1602 = vsinq.f32.pop %v1599
          %vm1603 = vweird.f32 %v1406
          %v1604 = vadd.s32 %v1600, 3
          %v1605 = vand.u32 %v1604, 3
          %vm1606 = vcmp.lt.s32.totalorder %v1605, 2
          %vm1607 = vcmp.eq.s32.totalorder %v1605, 0
          %v1608 = vxor.u32 %v1602, 2147483648
          %v1609 = vsel %vm1607, %v1601, %v1608
          %vm1610 = vcmp.eq.s32.totalorder %v1605, 2
          %v1611 = vxor.u32 %v1601, 2147483648
          %v1612 = vsel %vm1610, %v1611, %v1602
          %v1613 = vsel %vm1606, %v1609, %v1612
          %v1614 = vsel %vm1603, nan, %v1613
          %v1615 = vmul.f32 %v938, %v1510
          %v1616 = vmul.f32 %v938, %v1614
          %v1617 = vadd.f32 %v1393, %v1615
          %v1618 = vadd.f32 %v1395, %v1616
          %v1619 = vmul.f32 %v1403, %v1617
          %v1620 = vmul.f32 %v1404, %v1618
          %v1621 = vadd.f32 %v1619, %v1620
          %1622 = vadd.xlane.f32.xlu0 %v1621
          %v1623 = vpop.xlane.xlu0 %1622
          %v1624 = vmul.f32 %v1623, 0.00390625
          %v1625 = vmul.f32 %v633, %v1624
          %v1626 = vsel %vm950, %v1625, 0.0
          %v1627 = vrot.slane %v1626, 4
          %v1628 = vadd.f32 %v1626, %v1627
          %v1629 = vrot.slane %v1628, 2
          %v1630 = vadd.f32 %v1628, %v1629
          %v1631 = vrot.slane %v1630, 1
          %v1632 = vadd.f32 %v1630, %v1631
          %v1633 = vadd.f32 %v1632, %v634
          %v1634 = vmul.f32 %v1633, 0.5
          %v1635 = vtanh.pop %v1634
          %v1636 = vadd.f32 %v1635, 1.0
          %v1637 = vmul.f32 %v1636, 0.5
          %v1638 = vmul.f32 %v963, %v1633
          %v1639 = vand.u32 2147483647, %v1638
          %vm1640 = vcmp.le.f32.partialorder %v1639, 0.7853982
          %vm1641 = vcmp.lt.s32.totalorder %v1638, 0
          %v1642 = vand.u32 %v1638, 2139095040
          %v1643 = vshrl.u32 %v1642, 23
          %v1644 = vsub.s32 %v1643, 127
          %v1645 = vand.u32 2147483647, %v1638
          %v1646 = vand.u32 %v1645, 8388607
          %v1647 = vor.u32 %v1646, 8388608
          %v1648 = vsub.s32 0, %v1647
          %v1649 = vadd.s32 %v1644, 1
          %vm1650 = vcmp.gt.s32.totalorder %v1649, 0
          %v1651 = vsel %vm1650, %v1649, 0
          %v1652 = vshrl.u32 %v1651, 5
          %v1653 = vand.u32 %v1651, 31
          %v1654 = vsub.s32 32, %v1653
          %v1655 = vshrl.u32 683565275, %v1654
          %v1656 = vshll.u32 683565275, %v1653
          %v1657 = vshrl.u32 2475754826, %v1654
          %v1658 = vor.u32 %v1656, %v1657
          %v1659 = vshll.u32 2475754826, %v1653
          %v1660 = vshrl.u32 2131351028, %v1654
          %v1661 = vor.u32 %v1659, %v1660
          %v1662 = vshll.u32 2131351028, %v1653
          %v1663 = vshrl.u32 2102212464, %v1654
          %v1664 = vor.u32 %v1662, %v1663
          %v1665 = vshll.u32 2102212464, %v1653
          %v1666 = vshrl.u32 920167782, %v1654
          %v1667 = vor.u32 %v1665, %v1666
          %v1668 = vshll.u32 920167782, %v1653
          %v1669 = vshrl.u32 1326507024, %v1654
          %v1670 = vor.u32 %v1668, %v1669
          %vm1671 = vcmp.lt.s32.totalorder %v1652, 1
          %vm1672 = vcmp.lt.s32.totalorder %v1652, 2
          %vm1673 = vcmp.lt.s32.totalorder %v1652, 3
          %vm1674 = vcmp.lt.s32.totalorder %v1652, 4
          %v1675 = vsel %vm1671, %v1655, %v1658
          %v1676 = vsel %vm1674, %v1664, 2102212464
          %v1677 = vsel %vm1673, %v1661, %v1676
          %v1678 = vsel %vm1672, %v1675, %v1677
          %v1679 = vsel %vm1671, %v1658, %v1661
          %v1680 = vsel %vm1674, %v1667, 920167782
          %v1681 = vsel %vm1673, %v1664, %v1680
          %v1682 = vsel %vm1672, %v1679, %v1681
          %v1683 = vsel %vm1671, %v1661, %v1664
          %v1684 = vsel %vm1674, %v1670, 1326507024
          %v1685 = vsel %vm1673, %v1667, %v1684
          %v1686 = vsel %vm1672, %v1683, %v1685
          %v1687 = vshll.u32 %v1647, 8
          %v1688 = vmul.u32.u64.compose %v1687, %v1686
          %v1689 = vextract.low.u32 %v1688
          %v1690 = vextract.high.u32 %v1688
          %v1691 = vmul.u32.u64.compose %v1687, %v1682
          %v1692 = vextract.low.u32 %v1691
          %v1693 = vextract.high.u32 %v1691
          %v1694 = vmul.u32 %v1687, %v1678
          %v1695 = vadd.s32 %v1690, %v1692
          %vm1696 = vc.u32 %v1690, %v1692
          %v1697 = vadd.s32 %v1693, 1
          %v1698 = vsel %vm1696, %v1697, %v1693
          %v1699 = vadd.s32 %v1694, %v1698
          %v1700 = vadd.s32 %v1699, 536870912
          %v1701 = vshrl.u32 %v1700, 30
          %v1702 = vshll.u32 %v1701, 30
          %v1703 = vsub.s32 %v1699, %v1702
          %vm1704 = vcmp.lt.s32.totalorder %v1703, 0
          %v1705 = vsub.s32 0, %v1703
          %v1706 = vsel %vm1704, %v1705, %v1703
          %v1707 = vclz %v1706
          %v1708 = vsub.s32 %v1707, 2
          %vm1709 = vcmp.gt.s32.totalorder 0, %v1708
          %v1710 = vsel %vm1709, 0, %v1708
          %v1711 = vsub.s32 32, %v1710
          %v1712 = vshll.u32 %v1703, %v1710
          %v1713 = vshrl.u32 %v1695, %v1711
          %v1714 = vor.u32 %v1712, %v1713
          %v1715 = vsub.s32 4294967266, %v1710
          %v1716 = vadd.s32 %v1715, 127
          %v1717 = vshll.u32 %v1716, 23
          %v1718 = vor.u32 4788187, %v1717
          %v1719 = vand.u32 2147483647, %v1718
          %v1721 = vcvt.s32.f32 %v1714
          %v1722 = vmul.f32 %v1721, %v1719
          %v1723 = vxor.u32 %v1722, 2147483648
          %v1724 = vsel %vm1641, %v1723, %v1722
          %v1725 = vsub.s32 4, %v1701
          %v1726 = vsel %vm1641, %v1725, %v1701
          %v1727 = vsel %vm1640, %v1638, %v1724
          %v1728 = vsel %vm1640, 0, %v1726
          %v1729 = vcosq.f32.pop %v1727
          %v1730 = vsinq.f32.pop %v1727
          %vm1731 = vweird.f32 %v1638
          %v1732 = vadd.s32 %v1728, 3
          %v1733 = vand.u32 %v1732, 3
          %vm1734 = vcmp.lt.s32.totalorder %v1733, 2
          %vm1735 = vcmp.eq.s32.totalorder %v1733, 0
          %v1736 = vxor.u32 %v1730, 2147483648
          %v1737 = vsel %vm1735, %v1729, %v1736
          %vm1738 = vcmp.eq.s32.totalorder %v1733, 2
          %v1739 = vxor.u32 %v1729, 2147483648
          %v1740 = vsel %vm1738, %v1739, %v1730
          %v1741 = vsel %vm1734, %v1737, %v1740
          %v1742 = vsel %vm1731, nan, %v1741
          %v1743 = vmul.f32 %v1069, %v1742
          %v1744 = vadd.f32 %v1633, %v1743
          %v1745 = vmul.f32 %v1637, %v1744
          %v1746 = vlaneseq
          %v1747 = vshrl.u32 %v1746, 7
          %v1748 = vsub.s32 0, %v1747
          %v1749 = vrot.slane %v1745, %v1748
          %v1750 = vmul.f32 %v635, %v1749
          %v1751 = vsel %vm950, %v1750, 0.0
          %1752 = vadd.xlane.f32.xlu0 %v1751
          %v1753 = vpop.xlane.xlu0 %1752
          %v1754 = vadd.f32 %v1753, %v636
          %v1755 = vmul.f32 %v1754, 0.5
          %v1756 = vtanh.pop %v1755
          %v1757 = vadd.f32 %v1756, 1.0
          %v1758 = vmul.f32 %v1757, 0.5
          %1760 = vset.pattern.permute.xlu0 0
          %1761 = vperm.xlu0 %1760, %v1758
          %v1762 = vpop.permute.xlu0 %1761
          %v1764 = vmul.f32 %v1619, %v1762
          %v1765 = vmul.f32 %v1620, %v1762
          %v1766 = vadd.f32 %v1764, %v1324
          %v1767 = vadd.f32 %v1765, %v1325
          %v1768 = vmul.f32 %v1766, 0.5
          %v1769 = vmul.f32 %v1767, 0.5
          %v1770 = vtanh.pop %v1768
          %v1771 = vtanh.pop %v1769
          %v1772 = vadd.f32 %v1770, 1.0
          %v1773 = vadd.f32 %v1771, 1.0
          %v1774 = vmul.f32 %v1772, 0.5
          %v1775 = vmul.f32 %v1773, 0.5
          %v1776 = vmul.f32 %v1103, %v1766
          %v1777 = vmul.f32 %v1103, %v1767
          %v1778 = vand.u32 2147483647, %v1776
          %vm1779 = vcmp.le.f32.partialorder %v1778, 0.7853982
          %vm1780 = vcmp.lt.s32.totalorder %v1776, 0
          %v1781 = vand.u32 %v1776, 2139095040
          %v1782 = vshrl.u32 %v1781, 23
          %v1783 = vsub.s32 %v1782, 127
          %v1784 = vand.u32 2147483647, %v1776
          %v1785 = vand.u32 %v1784, 8388607
          %v1786 = vor.u32 %v1785, 8388608
          %v1787 = vsub.s32 0, %v1786
          %v1788 = vadd.s32 %v1783, 1
          %vm1789 = vcmp.gt.s32.totalorder %v1788, 0
          %v1790 = vsel %vm1789, %v1788, 0
          %v1791 = vshrl.u32 %v1790, 5
          %v1792 = vand.u32 %v1790, 31
          %v1793 = vsub.s32 32, %v1792
          %v1794 = vshrl.u32 683565275, %v1793
          %v1795 = vshll.u32 683565275, %v1792
          %v1796 = vshrl.u32 2475754826, %v1793
          %v1797 = vor.u32 %v1795, %v1796
          %v1798 = vshll.u32 2475754826, %v1792
          %v1799 = vshrl.u32 2131351028, %v1793
          %v1800 = vor.u32 %v1798, %v1799
          %v1801 = vshll.u32 2131351028, %v1792
          %v1802 = vshrl.u32 2102212464, %v1793
          %v1803 = vor.u32 %v1801, %v1802
          %v1804 = vshll.u32 2102212464, %v1792
          %v1805 = vshrl.u32 920167782, %v1793
          %v1806 = vor.u32 %v1804, %v1805
          %v1807 = vshll.u32 920167782, %v1792
          %v1808 = vshrl.u32 1326507024, %v1793
          %v1809 = vor.u32 %v1807, %v1808
          %vm1810 = vcmp.lt.s32.totalorder %v1791, 1
          %vm1811 = vcmp.lt.s32.totalorder %v1791, 2
          %vm1812 = vcmp.lt.s32.totalorder %v1791, 3
          %vm1813 = vcmp.lt.s32.totalorder %v1791, 4
          %v1814 = vsel %vm1810, %v1794, %v1797
          %v1815 = vsel %vm1813, %v1803, 2102212464
          %v1816 = vsel %vm1812, %v1800, %v1815
          %v1817 = vsel %vm1811, %v1814, %v1816
          %v1818 = vsel %vm1810, %v1797, %v1800
          %v1819 = vsel %vm1813, %v1806, 920167782
          %v1820 = vsel %vm1812, %v1803, %v1819
          %v1821 = vsel %vm1811, %v1818, %v1820
          %v1822 = vsel %vm1810, %v1800, %v1803
          %v1823 = vsel %vm1813, %v1809, 1326507024
          %v1824 = vsel %vm1812, %v1806, %v1823
          %v1825 = vsel %vm1811, %v1822, %v1824
          %v1826 = vshll.u32 %v1786, 8
          %v1827 = vmul.u32.u64.compose %v1826, %v1825
          %v1828 = vextract.low.u32 %v1827
          %v1829 = vextract.high.u32 %v1827
          %v1830 = vmul.u32.u64.compose %v1826, %v1821
          %v1831 = vextract.low.u32 %v1830
          %v1832 = vextract.high.u32 %v1830
          %v1833 = vmul.u32 %v1826, %v1817
          %v1834 = vadd.s32 %v1829, %v1831
          %vm1835 = vc.u32 %v1829, %v1831
          %v1836 = vadd.s32 %v1832, 1
          %v1837 = vsel %vm1835, %v1836, %v1832
          %v1838 = vadd.s32 %v1833, %v1837
          %v1839 = vadd.s32 %v1838, 536870912
          %v1840 = vshrl.u32 %v1839, 30
          %v1841 = vshll.u32 %v1840, 30
          %v1842 = vsub.s32 %v1838, %v1841
          %vm1843 = vcmp.lt.s32.totalorder %v1842, 0
          %v1844 = vsub.s32 0, %v1842
          %v1845 = vsel %vm1843, %v1844, %v1842
          %v1846 = vclz %v1845
          %v1847 = vsub.s32 %v1846, 2
          %vm1848 = vcmp.gt.s32.totalorder 0, %v1847
          %v1849 = vsel %vm1848, 0, %v1847
          %v1850 = vsub.s32 32, %v1849
          %v1851 = vshll.u32 %v1842, %v1849
          %v1852 = vshrl.u32 %v1834, %v1850
          %v1853 = vor.u32 %v1851, %v1852
          %v1854 = vsub.s32 4294967266, %v1849
          %v1855 = vadd.s32 %v1854, 127
          %v1856 = vshll.u32 %v1855, 23
          %v1857 = vor.u32 4788187, %v1856
          %v1858 = vand.u32 2147483647, %v1857
          %v1860 = vcvt.s32.f32 %v1853
          %v1861 = vmul.f32 %v1860, %v1858
          %v1862 = vxor.u32 %v1861, 2147483648
          %v1863 = vsel %vm1780, %v1862, %v1861
          %v1864 = vsub.s32 4, %v1840
          %v1865 = vsel %vm1780, %v1864, %v1840
          %v1866 = vsel %vm1779, %v1776, %v1863
          %v1867 = vsel %vm1779, 0, %v1865
          %v1868 = vcosq.f32.pop %v1866
          %v1869 = vsinq.f32.pop %v1866
          %vm1870 = vweird.f32 %v1776
          %v1871 = vadd.s32 %v1867, 3
          %v1872 = vand.u32 %v1871, 3
          %vm1873 = vcmp.lt.s32.totalorder %v1872, 2
          %vm1874 = vcmp.eq.s32.totalorder %v1872, 0
          %v1875 = vxor.u32 %v1869, 2147483648
          %v1876 = vsel %vm1874, %v1868, %v1875
          %vm1877 = vcmp.eq.s32.totalorder %v1872, 2
          %v1878 = vxor.u32 %v1868, 2147483648
          %v1879 = vsel %vm1877, %v1878, %v1869
          %v1880 = vsel %vm1873, %v1876, %v1879
          %v1881 = vsel %vm1870, nan, %v1880
          %v1882 = vand.u32 2147483647, %v1777
          %vm1883 = vcmp.le.f32.partialorder %v1882, 0.7853982
          %vm1884 = vcmp.lt.s32.totalorder %v1777, 0
          %v1885 = vand.u32 %v1777, 2139095040
          %v1886 = vshrl.u32 %v1885, 23
          %v1887 = vsub.s32 %v1886, 127
          %v1888 = vand.u32 2147483647, %v1777
          %v1889 = vand.u32 %v1888, 8388607
          %v1890 = vor.u32 %v1889, 8388608
          %v1891 = vsub.s32 0, %v1890
          %v1892 = vadd.s32 %v1887, 1
          %vm1893 = vcmp.gt.s32.totalorder %v1892, 0
          %v1894 = vsel %vm1893, %v1892, 0
          %v1895 = vshrl.u32 %v1894, 5
          %v1896 = vand.u32 %v1894, 31
          %v1897 = vsub.s32 32, %v1896
          %v1898 = vshrl.u32 683565275, %v1897
          %v1899 = vshll.u32 683565275, %v1896
          %v1900 = vshrl.u32 2475754826, %v1897
          %v1901 = vor.u32 %v1899, %v1900
          %v1902 = vshll.u32 2475754826, %v1896
          %v1903 = vshrl.u32 2131351028, %v1897
          %v1904 = vor.u32 %v1902, %v1903
          %v1905 = vshll.u32 2131351028, %v1896
          %v1906 = vshrl.u32 2102212464, %v1897
          %v1907 = vor.u32 %v1905, %v1906
          %v1908 = vshll.u32 2102212464, %v1896
          %v1909 = vshrl.u32 920167782, %v1897
          %v1910 = vor.u32 %v1908, %v1909
          %v1911 = vshll.u32 920167782, %v1896
          %v1912 = vshrl.u32 1326507024, %v1897
          %v1913 = vor.u32 %v1911, %v1912
          %vm1914 = vcmp.lt.s32.totalorder %v1895, 1
          %vm1915 = vcmp.lt.s32.totalorder %v1895, 2
          %vm1916 = vcmp.lt.s32.totalorder %v1895, 3
          %vm1917 = vcmp.lt.s32.totalorder %v1895, 4
          %v1918 = vsel %vm1914, %v1898, %v1901
          %v1919 = vsel %vm1917, %v1907, 2102212464
          %v1920 = vsel %vm1916, %v1904, %v1919
          %v1921 = vsel %vm1915, %v1918, %v1920
          %v1922 = vsel %vm1914, %v1901, %v1904
          %v1923 = vsel %vm1917, %v1910, 920167782
          %v1924 = vsel %vm1916, %v1907, %v1923
          %v1925 = vsel %vm1915, %v1922, %v1924
          %v1926 = vsel %vm1914, %v1904, %v1907
          %v1927 = vsel %vm1917, %v1913, 1326507024
          %v1928 = vsel %vm1916, %v1910, %v1927
          %v1929 = vsel %vm1915, %v1926, %v1928
          %v1930 = vshll.u32 %v1890, 8
          %v1931 = vmul.u32.u64.compose %v1930, %v1929
          %v1932 = vextract.low.u32 %v1931
          %v1933 = vextract.high.u32 %v1931
          %v1934 = vmul.u32.u64.compose %v1930, %v1925
          %v1935 = vextract.low.u32 %v1934
          %v1936 = vextract.high.u32 %v1934
          %v1937 = vmul.u32 %v1930, %v1921
          %v1938 = vadd.s32 %v1933, %v1935
          %vm1939 = vc.u32 %v1933, %v1935
          %v1940 = vadd.s32 %v1936, 1
          %v1941 = vsel %vm1939, %v1940, %v1936
          %v1942 = vadd.s32 %v1937, %v1941
          %v1943 = vadd.s32 %v1942, 536870912
          %v1944 = vshrl.u32 %v1943, 30
          %v1945 = vshll.u32 %v1944, 30
          %v1946 = vsub.s32 %v1942, %v1945
          %vm1947 = vcmp.lt.s32.totalorder %v1946, 0
          %v1948 = vsub.s32 0, %v1946
          %v1949 = vsel %vm1947, %v1948, %v1946
          %v1950 = vclz %v1949
          %v1951 = vsub.s32 %v1950, 2
          %vm1952 = vcmp.gt.s32.totalorder 0, %v1951
          %v1953 = vsel %vm1952, 0, %v1951
          %v1954 = vsub.s32 32, %v1953
          %v1955 = vshll.u32 %v1946, %v1953
          %v1956 = vshrl.u32 %v1938, %v1954
          %v1957 = vor.u32 %v1955, %v1956
          %v1958 = vsub.s32 4294967266, %v1953
          %v1959 = vadd.s32 %v1958, 127
          %v1960 = vshll.u32 %v1959, 23
          %v1961 = vor.u32 4788187, %v1960
          %v1962 = vand.u32 2147483647, %v1961
          %v1964 = vcvt.s32.f32 %v1957
          %v1965 = vmul.f32 %v1964, %v1962
          %v1966 = vxor.u32 %v1965, 2147483648
          %v1967 = vsel %vm1884, %v1966, %v1965
          %v1968 = vsub.s32 4, %v1944
          %v1969 = vsel %vm1884, %v1968, %v1944
          %v1970 = vsel %vm1883, %v1777, %v1967
          %v1971 = vsel %vm1883, 0, %v1969
          %v1972 = vcosq.f32.pop %v1970
          %v1973 = vsinq.f32.pop %v1970
          %vm1974 = vweird.f32 %v1777
          %v1975 = vadd.s32 %v1971, 3
          %v1976 = vand.u32 %v1975, 3
          %vm1977 = vcmp.lt.s32.totalorder %v1976, 2
          %vm1978 = vcmp.eq.s32.totalorder %v1976, 0
          %v1979 = vxor.u32 %v1973, 2147483648
          %v1980 = vsel %vm1978, %v1972, %v1979
          %vm1981 = vcmp.eq.s32.totalorder %v1976, 2
          %v1982 = vxor.u32 %v1972, 2147483648
          %v1983 = vsel %vm1981, %v1982, %v1973
          %v1984 = vsel %vm1977, %v1980, %v1983
          %v1985 = vsel %vm1974, nan, %v1984
          %v1986 = vmul.f32 %v1314, %v1881
          %v1987 = vmul.f32 %v1314, %v1985
          %v1988 = vadd.f32 %v1766, %v1986
          %v1989 = vadd.f32 %v1767, %v1987
          %v1990 = vmul.f32 %v1774, %v1988
          %v1991 = vmul.f32 %v1775, %v1989
          %s1992 = scalar_lea.vmem %s383, 16 [#allocation9]
          %1993 = vst [vmem:[%s1992] sm:$0xff] %v1990
          %1994 = vst [vmem:[%s1992 + $0x8] sm:$0xff] %v1991
        $region80: #{tpu_custom_call.1} parent=59 // pred_fallthru
          _
        %s1995 = sand.u32 %s262, 1
        %s1996 = scalar_lea.sflag [#allocation7], %s1995
        %s1997 = sand.u32 %s262, 1
        %s1998 = smul.addr %s1997, 32
        %s1999 = scalar_lea.vmem [#allocation9], %s1998
        // Predicated region
        $region81: #{tpu_custom_call.1} parent=59 // pred_check
          %p2000 = pneg %p272
        $region82: #{tpu_custom_call.1} parent=59 // pred_check_branch
          %2002 = sbr.rel (%p2000) target = $region84
        $region83: #{tpu_custom_call.1} parent=59 // pred_region
          %s2003 = smul.u32 %s29, %s30
          %s2004 = smul.u32 2, %s2003
          %s2006 = ssub.s32 512, 512
          %2007 = vsyncadd %s1996, %s2006
          %s2008 = smul.addr %s2004, 2
          %s2009 = smul.addr %s2008, 128
          %s2010 = scalar_lea.hbm %s10, %s2009
          %s2011 = sshll.u32 %s1999, 4
          %s2012 = int_to_ptr.vmem [resolvable:$true] %s2011
          %2017 = dma.vmem_to_hbm [thread:$0]  %s2012, 512, %s2010, %s1996, 256, 256, 16
        $region84: #{tpu_custom_call.1} parent=59 // pred_fallthru
          _
      $region60: #{tpu_custom_call.1} parent=5 // pred_fallthru
        _
      %p2018 = scmp.le.s32.totalorder 2, %s20
      // Predicated region
      $region85: #{tpu_custom_call.1} parent=5 // pred_check
        %p2019 = pneg %p2018
      $region86: #{tpu_custom_call.1} parent=5 // pred_check_branch
        %2021 = sbr.rel (%p2019) target = $region88
      $region87: #{tpu_custom_call.1} parent=5 // pred_region
        %s2022 = ssub.s32 %s20, 2
        // Predicated region
        $region89: #{tpu_custom_call.1} parent=87 // pred_check
          %p2023 = pneg %p278
        $region90: #{tpu_custom_call.1} parent=87 // pred_check_branch
          %2025 = sbr.rel (%p2023) target = $region92
        $region91: #{tpu_custom_call.1} parent=87 // pred_region
          %s2026 = sand.u32 %s263, 1
          %s2027 = scalar_lea.sflag [#allocation7], %s2026
          %s2028 = sand.u32 %s263, 1
          %s2029 = smul.addr %s2028, 32
          %s2030 = scalar_lea.vmem [#allocation9], %s2029
          %2031 = dma.done %s2027, 512
        $region92: #{tpu_custom_call.1} parent=87 // pred_fallthru
          _
      $region88: #{tpu_custom_call.1} parent=5 // pred_fallthru
        _
    $region6: #{tpu_custom_call.1} parent=1 // loop_footer
      %s24 = sadd.s32 1, %s20
    $region7: #{tpu_custom_call.1} parent=1 // loop_footer_branch
      %19 = sbr.rel target = $region3
    $region8: #{tpu_custom_call.1} parent=1 // loop_exit
      _
    %2032 = vsyncpa [#allocation7], 1
    %s2033 = scalar_lea.sflag [#allocation7], 1
    %2034 = vsyncpa %s2033, 1
    %2035 = vsyncpa [#allocation8], 1
    %s2036 = scalar_lea.sflag [#allocation8], 1
    %2037 = vsyncpa %s2036, 1

</llo_original>
